<compile_context>
chip_gen: v7x
topology: tpu7x:2x2x1
jax: 0.10.0
libtpu: 0.0.40
codegen_flags: <defaults>
</compile_context>

<pallas_src>
import jax
import jax.numpy as jnp
from jax.experimental import pallas as pl
from jax.experimental.pallas import tpu as pltpu

EMB_DIM = 300        # embedding_dim=300 in the module
EMB_PAD = 384        # lane-aligned (multiple of 128) padded feature width
HIDDEN = 512         # nn.Linear(4*emb_size, 512)
NUM_CLASSES = 3      # nn.Linear(512, 3)
NC_PAD = 128         # lane-dense padded class dimension


def _round_up(x, m):
    return (x + m - 1) // m * m


def _usc_mlp_kernel(h_ref, p_ref, w1_ref, b1_ref, w2_ref, b2_ref, out_ref):
    h = h_ref[...]                                   # [TB, EMB_PAD] bf16
    p = p_ref[...]                                   # [TB, EMB_PAD] bf16

    # us = cat(h, p, |h-p|, h*p) @ w1  expressed as 4 accumulating MXU dots
    # against resident bf16 weight blocks (no concat materialized). Padded
    # lanes of h/p are zero and hit zero rows of the padded w1 -> exact.
    z1 = jnp.dot(h, w1_ref[0], preferred_element_type=jnp.float32)
    z1 = z1 + jnp.dot(p, w1_ref[1], preferred_element_type=jnp.float32)
    z1 = z1 + jnp.dot(jnp.abs(h - p), w1_ref[2],
                      preferred_element_type=jnp.float32)
    z1 = z1 + jnp.dot(h * p, w1_ref[3], preferred_element_type=jnp.float32)
    z1 = jnp.maximum(z1 + b1_ref[...], 0.0)          # ReLU, [TB, HIDDEN] f32

    # Linear(512 -> 3) padded to 128 lane-dense output columns (zero padding;
    # softmax happens in the wrapper on the real 3 columns only).
    z2 = jnp.dot(z1.astype(jnp.bfloat16), w2_ref[...],
                 preferred_element_type=jnp.float32) + b2_ref[...]
    out_ref[...] = z2.astype(out_ref.dtype)          # bf16 logits [TB, NC_PAD]


def prepare_usc_params(params):
    """One-time re-packing of parameters into kernel-friendly layouts."""
    E = EMB_DIM
    # Pad embedding tables to 384 lane-aligned columns and cast to bf16 once
    # (halves gather bandwidth; pooled vectors come out lane-aligned).
    emb_h = jnp.pad(params["emb_h"], ((0, 0), (0, EMB_PAD - E))).astype(jnp.bfloat16)
    emb_p = jnp.pad(params["emb_p"], ((0, 0), (0, EMB_PAD - E))).astype(jnp.bfloat16)

    # w1 [4E, H] -> [4, EMB_PAD, H] bf16 with zero-padded K blocks.
    w1 = params["w1"].reshape(4, E, HIDDEN)
    w1_packed = jnp.pad(w1, ((0, 0), (0, EMB_PAD - E), (0, 0))).astype(jnp.bfloat16)

    b1 = params["b1"].reshape(1, HIDDEN).astype(jnp.float32)

    # Lane-dense classifier: zero-pad to 128 output columns (padded columns
    # are never read back; wrapper slices the first 3).
    w2_packed = jnp.pad(params["w2"],
                        ((0, 0), (0, NC_PAD - NUM_CLASSES))).astype(jnp.bfloat16)
    b2_packed = jnp.pad(params["b2"].reshape(1, NUM_CLASSES),
                        ((0, 0), (0, NC_PAD - NUM_CLASSES))).astype(jnp.float32)

    return {"emb_h": emb_h, "emb_p": emb_p, "w1": w1_packed, "b1": b1,
            "w2": w2_packed, "b2": b2_packed}


def usc_forward(h_tok, h_len, p_tok, p_len, prepared, *, batch_tile=512):
    """USC(encoder='baseline') forward. h_tok/p_tok: [B, L] int token ids."""
    del h_len, p_len  # the baseline encoder ignores lengths (mean over full L)

    # ---- baseline encoders: bf16 embedding gather, f32 mean over L. ----
    h = jnp.sum(jnp.take(prepared["emb_h"], h_tok.astype(jnp.int32), axis=0),
                axis=1, dtype=jnp.float32) * (1.0 / h_tok.shape[1])
    p = jnp.sum(jnp.take(prepared["emb_p"], p_tok.astype(jnp.int32), axis=0),
                axis=1, dtype=jnp.float32) * (1.0 / p_tok.shape[1])
    h = h.astype(jnp.bfloat16)          # bf16 kernel inputs -> half the tile DMA
    p = p.astype(jnp.bfloat16)

    B = h.shape[0]
    B8 = _round_up(B, 8)
    # Big tiles (default 512) amortize per-step overhead; keep >= 2 grid steps
    # when possible so the parallel batch axis uses both v7x TensorCores.
    TB = min(batch_tile, _round_up(max(B8 // 2, 8), 8))
    Bp = _round_up(B8, TB)

    # Only the (cheap) batch-row pad remains; feature dim is already 384.
    h = jnp.pad(h, ((0, Bp - B), (0, 0)))
    p = jnp.pad(p, ((0, Bp - B), (0, 0)))

    logits = pl.pallas_call(
        _usc_mlp_kernel,
        out_shape=jax.ShapeDtypeStruct((Bp, NC_PAD), jnp.bfloat16),
        grid_spec=pltpu.PrefetchScalarGridSpec(
            num_scalar_prefetch=0,
            grid=(Bp // TB,),
            in_specs=[
                pl.BlockSpec((TB, EMB_PAD), lambda i: (i, 0)),               # h tile
                pl.BlockSpec((TB, EMB_PAD), lambda i: (i, 0)),               # p tile
                pl.BlockSpec((4, EMB_PAD, HIDDEN), lambda i: (0, 0, 0)),     # w1 (resident)
                pl.BlockSpec((1, HIDDEN), lambda i: (0, 0)),                 # b1 (resident)
                pl.BlockSpec((HIDDEN, NC_PAD), lambda i: (0, 0)),            # w2 (resident)
                pl.BlockSpec((1, NC_PAD), lambda i: (0, 0)),                 # b2 (resident)
            ],
            out_specs=pl.BlockSpec((TB, NC_PAD), lambda i: (i, 0)),
        ),
        compiler_params=pltpu.CompilerParams(
            dimension_semantics=("parallel",),
            vmem_limit_bytes=32 * 1024 * 1024,   # per-step usage is a few MiB
        ),
    )(h, p, prepared["w1"], prepared["b1"], prepared["w2"], prepared["b2"])

    # Exact softmax on the tiny [B, 3] slice (exactly-normalized probs).
    return jax.nn.softmax(logits[:B, :NUM_CLASSES].astype(jnp.float32), axis=-1)


def _reference(h_tok, p_tok, params):
    """Pure-JAX f32 reference of the same forward pass (correctness check)."""
    h = jnp.mean(jnp.take(params["emb_h"], h_tok, axis=0), axis=1)
    p = jnp.mean(jnp.take(params["emb_p"], p_tok, axis=0), axis=1)
    us = jnp.concatenate([h, p, jnp.abs(h - p), h * p], axis=1)
    z1 = jnp.maximum(us @ params["w1"] + params["b1"], 0.0)
    z2 = z1 @ params["w2"] + params["b2"]
    return jax.nn.softmax(z2, axis=-1)


if __name__ == "__main__":
    key = jax.random.PRNGKey(0)
    k_emb, k_w1, k_b1, k_w2, k_b2, k_h, k_p = jax.random.split(key, 7)

    B, L, V = 2, 8, 50  # batch, sentence length, vocab size

    vector_embeddings = jax.random.normal(k_emb, (V, EMB_DIM), jnp.float32) * 0.1
    params = {
        # Both encoders copy the same vector_embeddings in the PyTorch module.
        "emb_h": vector_embeddings,
        "emb_p": vector_embeddings,
        "w1": jax.random.normal(k_w1, (4 * EMB_DIM, HIDDEN), jnp.float32) * 0.05,
        "b1": jax.random.normal(k_b1, (1, HIDDEN), jnp.float32) * 0.01,
        "w2": jax.random.normal(k_w2, (HIDDEN, NUM_CLASSES), jnp.float32) * 0.05,
        "b2": jax.random.normal(k_b2, (1, NUM_CLASSES), jnp.float32) * 0.01,
    }
    prepared = prepare_usc_params(params)   # one-time re-pack (outside jit)

    h_tok = jax.random.randint(k_h, (B, L), 0, V, jnp.int32)
    p_tok = jax.random.randint(k_p, (B, L), 0, V, jnp.int32)
    h_len = jnp.full((B,), L, jnp.int32)
    p_len = jnp.full((B,), L, jnp.int32)

    out = jax.jit(usc_forward)(h_tok, h_len, p_tok, p_len, prepared)
    out = jax.block_until_ready(out)

    ref = _reference(h_tok, p_tok, params)
    assert out.shape == (B, NUM_CLASSES)
    # bf16 embeddings / activations / weights -> slightly looser tolerance.
    assert bool(jnp.allclose(out, ref, atol=2e-2, rtol=2e-2)), (out, ref)
    # Softmax is computed exactly in f32 in the wrapper -> rows sum to 1.
    assert bool(jnp.allclose(jnp.sum(out, axis=-1), 1.0, atol=1e-5))

    print("KERNEL_OK")
</pallas_src>

<mosaic_0001>
module attributes {stable_mosaic.version = 11 : i64} {
  func.func @_usc_mlp_kernel(%arg0: i32, %arg1: memref<8x384xbf16, #tpu.memory_space<vmem>>, %arg2: memref<8x384xbf16, #tpu.memory_space<vmem>>, %arg3: memref<4x384x512xbf16, #tpu.memory_space<vmem>>, %arg4: memref<1x512xf32, #tpu.memory_space<vmem>>, %arg5: memref<512x128xbf16, #tpu.memory_space<vmem>>, %arg6: memref<1x128xf32, #tpu.memory_space<vmem>>, %arg7: memref<8x128xbf16, #tpu.memory_space<vmem>>) attributes {dimension_semantics = [#tpu.dimension_semantics<parallel>], iteration_bounds = array<i64: 1>, scalar_prefetch = 0 : i64, scratch_operands = 0 : i64, tpu.core_type = #tpu.core_type<tc>, window_params = [{transform_indices = @transform_0, window_bounds = array<i64: 8, 384>}, {transform_indices = @transform_1, window_bounds = array<i64: 8, 384>}, {pipeline_mode = #tpu.pipeline_mode<synchronous>, transform_indices = @transform_2, window_bounds = array<i64: 4, 384, 512>}, {pipeline_mode = #tpu.pipeline_mode<synchronous>, transform_indices = @transform_3, window_bounds = array<i64: 1, 512>}, {pipeline_mode = #tpu.pipeline_mode<synchronous>, transform_indices = @transform_4, window_bounds = array<i64: 512, 128>}, {pipeline_mode = #tpu.pipeline_mode<synchronous>, transform_indices = @transform_5, window_bounds = array<i64: 1, 128>}, {transform_indices = @transform_6, window_bounds = array<i64: 8, 128>}]} {
    %c0 = arith.constant 0 : index
    %c0_0 = arith.constant 0 : index
    %0 = vector.load %arg1[%c0, %c0_0] : memref<8x384xbf16, #tpu.memory_space<vmem>>, vector<8x384xbf16>
    %c0_1 = arith.constant 0 : index
    %c0_2 = arith.constant 0 : index
    %1 = vector.load %arg2[%c0_1, %c0_2] : memref<8x384xbf16, #tpu.memory_space<vmem>>, vector<8x384xbf16>
    %c0_3 = arith.constant 0 : index
    %c0_4 = arith.constant 0 : index
    %c0_5 = arith.constant 0 : index
    %2 = vector.load %arg3[%c0_3, %c0_4, %c0_5] : memref<4x384x512xbf16, #tpu.memory_space<vmem>>, vector<1x384x512xbf16>
    %3 = vector.shape_cast %2 : vector<1x384x512xbf16> to vector<384x512xbf16>
    %cst = arith.constant dense<0.000000e+00> : vector<8x512xf32>
    %4 = tpu.matmul %0, %3, %cst {dimension_numbers = #tpu.dot_dimension_numbers<[1], [0], [0], [1], [0, 0, 1, 1], [], []>} : vector<8x384xbf16>, vector<384x512xbf16>, vector<8x512xf32> -> vector<8x512xf32>
    %c1 = arith.constant 1 : index
    %c0_6 = arith.constant 0 : index
    %c0_7 = arith.constant 0 : index
    %5 = vector.load %arg3[%c1, %c0_6, %c0_7] : memref<4x384x512xbf16, #tpu.memory_space<vmem>>, vector<1x384x512xbf16>
    %6 = vector.shape_cast %5 : vector<1x384x512xbf16> to vector<384x512xbf16>
    %cst_8 = arith.constant dense<0.000000e+00> : vector<8x512xf32>
    %7 = tpu.matmul %1, %6, %cst_8 {dimension_numbers = #tpu.dot_dimension_numbers<[1], [0], [0], [1], [0, 0, 1, 1], [], []>} : vector<8x384xbf16>, vector<384x512xbf16>, vector<8x512xf32> -> vector<8x512xf32>
    %8 = arith.addf %4, %7 : vector<8x512xf32>
    %9 = arith.subf %0, %1 : vector<8x384xbf16>
    %10 = math.absf %9 : vector<8x384xbf16>
    %c2 = arith.constant 2 : index
    %c0_9 = arith.constant 0 : index
    %c0_10 = arith.constant 0 : index
    %11 = vector.load %arg3[%c2, %c0_9, %c0_10] : memref<4x384x512xbf16, #tpu.memory_space<vmem>>, vector<1x384x512xbf16>
    %12 = vector.shape_cast %11 : vector<1x384x512xbf16> to vector<384x512xbf16>
    %cst_11 = arith.constant dense<0.000000e+00> : vector<8x512xf32>
    %13 = tpu.matmul %10, %12, %cst_11 {dimension_numbers = #tpu.dot_dimension_numbers<[1], [0], [0], [1], [0, 0, 1, 1], [], []>} : vector<8x384xbf16>, vector<384x512xbf16>, vector<8x512xf32> -> vector<8x512xf32>
    %14 = arith.addf %8, %13 : vector<8x512xf32>
    %15 = arith.mulf %0, %1 : vector<8x384xbf16>
    %c3 = arith.constant 3 : index
    %c0_12 = arith.constant 0 : index
    %c0_13 = arith.constant 0 : index
    %16 = vector.load %arg3[%c3, %c0_12, %c0_13] : memref<4x384x512xbf16, #tpu.memory_space<vmem>>, vector<1x384x512xbf16>
    %17 = vector.shape_cast %16 : vector<1x384x512xbf16> to vector<384x512xbf16>
    %cst_14 = arith.constant dense<0.000000e+00> : vector<8x512xf32>
    %18 = tpu.matmul %15, %17, %cst_14 {dimension_numbers = #tpu.dot_dimension_numbers<[1], [0], [0], [1], [0, 0, 1, 1], [], []>} : vector<8x384xbf16>, vector<384x512xbf16>, vector<8x512xf32> -> vector<8x512xf32>
    %19 = arith.addf %14, %18 : vector<8x512xf32>
    %c0_15 = arith.constant 0 : index
    %c0_16 = arith.constant 0 : index
    %20 = vector.load %arg4[%c0_15, %c0_16] : memref<1x512xf32, #tpu.memory_space<vmem>>, vector<1x512xf32>
    %21 = vector.broadcast %20 : vector<1x512xf32> to vector<8x512xf32>
    %22 = arith.addf %19, %21 : vector<8x512xf32>
    %cst_17 = arith.constant 0.000000e+00 : f32
    %23 = vector.broadcast %cst_17 : f32 to vector<8x512xf32>
    %24 = arith.maximumf %22, %23 : vector<8x512xf32>
    %25 = arith.truncf %24 : vector<8x512xf32> to vector<8x512xbf16>
    %c0_18 = arith.constant 0 : index
    %c0_19 = arith.constant 0 : index
    %26 = vector.load %arg5[%c0_18, %c0_19] : memref<512x128xbf16, #tpu.memory_space<vmem>>, vector<512x128xbf16>
    %cst_20 = arith.constant dense<0.000000e+00> : vector<8x128xf32>
    %27 = tpu.matmul %25, %26, %cst_20 {dimension_numbers = #tpu.dot_dimension_numbers<[1], [0], [0], [1], [0, 0, 1, 1], [], []>} : vector<8x512xbf16>, vector<512x128xbf16>, vector<8x128xf32> -> vector<8x128xf32>
    %c0_21 = arith.constant 0 : index
    %c0_22 = arith.constant 0 : index
    %28 = vector.load %arg6[%c0_21, %c0_22] : memref<1x128xf32, #tpu.memory_space<vmem>>, vector<1x128xf32>
    %29 = vector.broadcast %28 : vector<1x128xf32> to vector<8x128xf32>
    %30 = arith.addf %27, %29 : vector<8x128xf32>
    %31 = arith.truncf %30 : vector<8x128xf32> to vector<8x128xbf16>
    %c0_23 = arith.constant 0 : index
    %c0_24 = arith.constant 0 : index
    %32 = vector.load %arg7[%c0_23, %c0_24] : memref<8x128xbf16, #tpu.memory_space<vmem>>, vector<8x128xbf16>
    tpu.vector_store %arg7[%c0_23, %c0_24], %31 {strides = array<i32>} : memref<8x128xbf16, #tpu.memory_space<vmem>>, vector<8x128xbf16>,
    return
  }
  func.func @transform_0(%arg0: i32) -> (i32, i32) {
    %c0_i32 = arith.constant 0 : i32
    %c0_i32_0 = arith.constant 0 : i32
    return %arg0, %c0_i32 : i32, i32
  }
  func.func @transform_1(%arg0: i32) -> (i32, i32) {
    %c0_i32 = arith.constant 0 : i32
    %c0_i32_0 = arith.constant 0 : i32
    return %arg0, %c0_i32 : i32, i32
  }
  func.func @transform_2(%arg0: i32) -> (i32, i32, i32) {
    %c0_i32 = arith.constant 0 : i32
    %c0_i32_0 = arith.constant 0 : i32
    %c0_i32_1 = arith.constant 0 : i32
    %c0_i32_2 = arith.constant 0 : i32
    return %c0_i32, %c0_i32_0, %c0_i32_1 : i32, i32, i32
  }
  func.func @transform_3(%arg0: i32) -> (i32, i32) {
    %c0_i32 = arith.constant 0 : i32
    %c0_i32_0 = arith.constant 0 : i32
    %c0_i32_1 = arith.constant 0 : i32
    return %c0_i32, %c0_i32_0 : i32, i32
  }
  func.func @transform_4(%arg0: i32) -> (i32, i32) {
    %c0_i32 = arith.constant 0 : i32
    %c0_i32_0 = arith.constant 0 : i32
    %c0_i32_1 = arith.constant 0 : i32
    return %c0_i32, %c0_i32_0 : i32, i32
  }
  func.func @transform_5(%arg0: i32) -> (i32, i32) {
    %c0_i32 = arith.constant 0 : i32
    %c0_i32_0 = arith.constant 0 : i32
    %c0_i32_1 = arith.constant 0 : i32
    return %c0_i32, %c0_i32_0 : i32, i32
  }
  func.func @transform_6(%arg0: i32) -> (i32, i32) {
    %c0_i32 = arith.constant 0 : i32
    %c0_i32_0 = arith.constant 0 : i32
    return %arg0, %c0_i32 : i32, i32
  }
}

</mosaic_0001>

<llo_original>
// kernel: usc_forward.1
$region0: #{usc_forward.1}
  #allocation0 [shape = 'u32[]', space=smem, size = 0x4, offset = 0x4, fixed_abs, tag = 'smem constant byte address 0x4 - core index']
  #allocation1 [shape = 'u32[144,128]{1,0:T(1,128)}', space=vmem, size = 0x12000, scoped, tag = 'internal scratch']
  %s0 = inlined_call_operand.vmem [shape: bf16[8,384], index: 0, kind: input, shape index: {}]
  %s1 = inlined_call_operand.vmem [shape: bf16[8,384], index: 1, kind: input, shape index: {}]
  %s2 = inlined_call_operand.hbm [shape: bf16[4,384,512], index: 2, kind: input, shape index: {}]
  %s3 = inlined_call_operand.hbm [shape: f32[1,512], index: 3, kind: input, shape index: {}]
  %s4 = inlined_call_operand.hbm [shape: bf16[512,128], index: 4, kind: input, shape index: {}]
  %s5 = inlined_call_operand.hbm [shape: f32[1,128], index: 5, kind: input, shape index: {}]
  %s6 = inlined_call_operand.vmem [shape: bf16[8,128], index: 6, kind: output, shape index: {}]
  %s7 = sld [smem:[#allocation0]]
  $region50: #{usc_forward.1} parent=0
    _
  %s9 = ssub.s32 1, %s7
  %s10 = scalar_select 0, %s9, %s7
  $region1: #{usc_forward.1} parent=0
    #allocation2 [shape = 'u8[1572864]{0}', space=vmem, size = 0x180000, scoped, tag = 'input window, operand 2, single buffered']
    #allocation3 [shape = 's32[1]{0}', space=sflag, size = 0x4, scoped, tag = 'scoped memory for usc_forward.1']
    #allocation4 [shape = 'u8[2048]{0}', space=vmem, size = 0x800, scoped, tag = 'input window, operand 3, single buffered']
    #allocation5 [shape = 's32[1]{0}', space=sflag, size = 0x4, scoped, tag = 'scoped memory for usc_forward.1']
    #allocation6 [shape = 'u8[131072]{0}', space=vmem, size = 0x20000, scoped, tag = 'input window, operand 4, single buffered']
    #allocation7 [shape = 'u8[512]{0}', space=vmem, size = 0x400, scoped, tag = 'input window, operand 5, single buffered']
    #allocation8 [shape = 's32[1]{0}', space=sflag, size = 0x4, scoped, tag = 'scoped memory for usc_forward.1']
    %11 = vsyncpa [#allocation3], 0
    %12 = vsyncpa [#allocation5], 0
    %13 = vsyncpa [#allocation8], 0
    // Predicated region
    $region2: #{usc_forward.1} parent=1 // pred_check
      _
    $region3: #{usc_forward.1} parent=1 // pred_check_branch
      %15 = sbr.rel (0) target = $region5
    $region4: #{usc_forward.1} parent=1 // pred_region
      _
    $region5: #{usc_forward.1} parent=1 // pred_fallthru
      _
    // Predicated region
    $region6: #{usc_forward.1} parent=1 // pred_check
      _
    $region7: #{usc_forward.1} parent=1 // pred_check_branch
      %17 = sbr.rel (0) target = $region9
    $region8: #{usc_forward.1} parent=1 // pred_region
      _
    $region9: #{usc_forward.1} parent=1 // pred_fallthru
      _
    // Predicated region
    $region10: #{usc_forward.1} parent=1 // pred_check
      _
    $region11: #{usc_forward.1} parent=1 // pred_check_branch
      %19 = sbr.rel (0) target = $region13
    $region12: #{usc_forward.1} parent=1 // pred_region
      %s21 = ssub.s32 49152, 49152
      %22 = vsyncadd [#allocation3], %s21
      %s23 = sshll.u32 [#allocation2], 4
      %s24 = int_to_ptr.vmem [resolvable:$true] %s23
      %29 = dma.hbm_to_vmem [thread:$0]  %s2, 49152, %s24, [#allocation3], 256, 256, 16
    $region13: #{usc_forward.1} parent=1 // pred_fallthru
      _
    // Predicated region
    $region14: #{usc_forward.1} parent=1 // pred_check
      _
    $region15: #{usc_forward.1} parent=1 // pred_check_branch
      %31 = sbr.rel (0) target = $region17
    $region16: #{usc_forward.1} parent=1 // pred_region
      %s33 = ssub.s32 64, 64
      %34 = vsyncadd [#allocation5], %s33
      %s36 = sshll.u32 [#allocation4], 4
      %s37 = int_to_ptr.vmem [resolvable:$true] %s36
      %39 = dma.hbm_to_vmem [thread:$0]  %s3, 64, %s37, [#allocation5]
    $region17: #{usc_forward.1} parent=1 // pred_fallthru
      _
    // Predicated region
    $region18: #{usc_forward.1} parent=1 // pred_check
      _
    $region19: #{usc_forward.1} parent=1 // pred_check_branch
      %41 = sbr.rel (0) target = $region21
    $region20: #{usc_forward.1} parent=1 // pred_region
      %s43 = ssub.s32 4096, 4096
      %44 = vsyncadd [#allocation5], %s43
      %s45 = sshll.u32 [#allocation6], 4
      %s46 = int_to_ptr.vmem [resolvable:$true] %s45
      %51 = dma.hbm_to_vmem [thread:$0]  %s4, 4096, %s46, [#allocation5], 64, 64, 4
    $region21: #{usc_forward.1} parent=1 // pred_fallthru
      _
    // Predicated region
    $region22: #{usc_forward.1} parent=1 // pred_check
      _
    $region23: #{usc_forward.1} parent=1 // pred_check_branch
      %53 = sbr.rel (0) target = $region25
    $region24: #{usc_forward.1} parent=1 // pred_region
      %s55 = ssub.s32 16, 16
      %56 = vsyncadd [#allocation8], %s55
      %s58 = sshll.u32 [#allocation7], 4
      %s59 = int_to_ptr.vmem [resolvable:$true] %s58
      %61 = dma.hbm_to_vmem [thread:$0]  %s5, 16, %s59, [#allocation8]
    $region25: #{usc_forward.1} parent=1 // pred_fallthru
      _
    // Predicated region
    $region26: #{usc_forward.1} parent=1 // pred_check
      _
    $region27: #{usc_forward.1} parent=1 // pred_check_branch
      %63 = sbr.rel (0) target = $region29
    $region28: #{usc_forward.1} parent=1 // pred_region
      %64 = dma.done [#allocation3], 49152
    $region29: #{usc_forward.1} parent=1 // pred_fallthru
      _
    // Predicated region
    $region30: #{usc_forward.1} parent=1 // pred_check
      _
    $region31: #{usc_forward.1} parent=1 // pred_check_branch
      %66 = sbr.rel (0) target = $region33
    $region32: #{usc_forward.1} parent=1 // pred_region
      %67 = dma.done [#allocation5], 64
    $region33: #{usc_forward.1} parent=1 // pred_fallthru
      _
    // Predicated region
    $region34: #{usc_forward.1} parent=1 // pred_check
      _
    $region35: #{usc_forward.1} parent=1 // pred_check_branch
      %69 = sbr.rel (0) target = $region37
    $region36: #{usc_forward.1} parent=1 // pred_region
      %70 = dma.done [#allocation5], 4096
    $region37: #{usc_forward.1} parent=1 // pred_fallthru
      _
    // Predicated region
    $region38: #{usc_forward.1} parent=1 // pred_check
      _
    $region39: #{usc_forward.1} parent=1 // pred_check_branch
      %72 = sbr.rel (0) target = $region41
    $region40: #{usc_forward.1} parent=1 // pred_region
      %73 = dma.done [#allocation8], 16
    $region41: #{usc_forward.1} parent=1 // pred_fallthru
      _
    %v75 = vld [vmem:[%s0] sm:$0xff]
    %v76 = vld [vmem:[%s0 + $0x8] sm:$0xf]
    %v77 = vld [vmem:[%s1] sm:$0xff]
    %v78 = vld [vmem:[%s1 + $0x8] sm:$0xf]
    %v79 = vld [vmem:[#allocation2] sm:$0xff]
    %v80 = vld [vmem:[#allocation2 + $0x8] sm:$0xff]
    %v81 = vld [vmem:[#allocation2 + $0x10] sm:$0xff]
    %v82 = vld [vmem:[#allocation2 + $0x18] sm:$0xff]
    %v83 = vld [vmem:[#allocation2 + $0x20] sm:$0xff]
    %v84 = vld [vmem:[#allocation2 + $0x28] sm:$0xff]
    %v85 = vld [vmem:[#allocation2 + $0x30] sm:$0xff]
    %v86 = vld [vmem:[#allocation2 + $0x38] sm:$0xff]
    %v87 = vld [vmem:[#allocation2 + $0x40] sm:$0xff]
    %v88 = vld [vmem:[#allocation2 + $0x48] sm:$0xff]
    %v89 = vld [vmem:[#allocation2 + $0x50] sm:$0xff]
    %v90 = vld [vmem:[#allocation2 + $0x58] sm:$0xff]
    %v91 = vld [vmem:[#allocation2 + $0x60] sm:$0xff]
    %v92 = vld [vmem:[#allocation2 + $0x68] sm:$0xff]
    %v93 = vld [vmem:[#allocation2 + $0x70] sm:$0xff]
    %v94 = vld [vmem:[#allocation2 + $0x78] sm:$0xff]
    %v95 = vld [vmem:[#allocation2 + $0x80] sm:$0xff]
    %v96 = vld [vmem:[#allocation2 + $0x88] sm:$0xff]
    %v97 = vld [vmem:[#allocation2 + $0x90] sm:$0xff]
    %v98 = vld [vmem:[#allocation2 + $0x98] sm:$0xff]
    %v99 = vld [vmem:[#allocation2 + $0xa0] sm:$0xff]
    %v100 = vld [vmem:[#allocation2 + $0xa8] sm:$0xff]
    %v101 = vld [vmem:[#allocation2 + $0xb0] sm:$0xff]
    %v102 = vld [vmem:[#allocation2 + $0xb8] sm:$0xff]
    %v103 = vld [vmem:[#allocation2 + $0xc0] sm:$0xff]
    %v104 = vld [vmem:[#allocation2 + $0xc8] sm:$0xff]
    %v105 = vld [vmem:[#allocation2 + $0xd0] sm:$0xff]
    %v106 = vld [vmem:[#allocation2 + $0xd8] sm:$0xff]
    %v107 = vld [vmem:[#allocation2 + $0xe0] sm:$0xff]
    %v108 = vld [vmem:[#allocation2 + $0xe8] sm:$0xff]
    %v109 = vld [vmem:[#allocation2 + $0xf0] sm:$0xff]
    %v110 = vld [vmem:[#allocation2 + $0xf8] sm:$0xff]
    %v111 = vld [vmem:[#allocation2 + $0x100] sm:$0xff]
    %v112 = vld [vmem:[#allocation2 + $0x108] sm:$0xff]
    %v113 = vld [vmem:[#allocation2 + $0x110] sm:$0xff]
    %v114 = vld [vmem:[#allocation2 + $0x118] sm:$0xff]
    %v115 = vld [vmem:[#allocation2 + $0x120] sm:$0xff]
    %v116 = vld [vmem:[#allocation2 + $0x128] sm:$0xff]
    %v117 = vld [vmem:[#allocation2 + $0x130] sm:$0xff]
    %v118 = vld [vmem:[#allocation2 + $0x138] sm:$0xff]
    %v119 = vld [vmem:[#allocation2 + $0x140] sm:$0xff]
    %v120 = vld [vmem:[#allocation2 + $0x148] sm:$0xff]
    %v121 = vld [vmem:[#allocation2 + $0x150] sm:$0xff]
    %v122 = vld [vmem:[#allocation2 + $0x158] sm:$0xff]
    %v123 = vld [vmem:[#allocation2 + $0x160] sm:$0xff]
    %v124 = vld [vmem:[#allocation2 + $0x168] sm:$0xff]
    %v125 = vld [vmem:[#allocation2 + $0x170] sm:$0xff]
    %v126 = vld [vmem:[#allocation2 + $0x178] sm:$0xff]
    %v127 = vld [vmem:[#allocation2 + $0x180] sm:$0xff]
    %v128 = vld [vmem:[#allocation2 + $0x188] sm:$0xff]
    %v129 = vld [vmem:[#allocation2 + $0x190] sm:$0xff]
    %v130 = vld [vmem:[#allocation2 + $0x198] sm:$0xff]
    %v131 = vld [vmem:[#allocation2 + $0x1a0] sm:$0xff]
    %v132 = vld [vmem:[#allocation2 + $0x1a8] sm:$0xff]
    %v133 = vld [vmem:[#allocation2 + $0x1b0] sm:$0xff]
    %v134 = vld [vmem:[#allocation2 + $0x1b8] sm:$0xff]
    %v135 = vld [vmem:[#allocation2 + $0x1c0] sm:$0xff]
    %v136 = vld [vmem:[#allocation2 + $0x1c8] sm:$0xff]
    %v137 = vld [vmem:[#allocation2 + $0x1d0] sm:$0xff]
    %v138 = vld [vmem:[#allocation2 + $0x1d8] sm:$0xff]
    %v139 = vld [vmem:[#allocation2 + $0x1e0] sm:$0xff]
    %v140 = vld [vmem:[#allocation2 + $0x1e8] sm:$0xff]
    %v141 = vld [vmem:[#allocation2 + $0x1f0] sm:$0xff]
    %v142 = vld [vmem:[#allocation2 + $0x1f8] sm:$0xff]
    %v143 = vld [vmem:[#allocation2 + $0x200] sm:$0xff]
    %v144 = vld [vmem:[#allocation2 + $0x208] sm:$0xff]
    %v145 = vld [vmem:[#allocation2 + $0x210] sm:$0xff]
    %v146 = vld [vmem:[#allocation2 + $0x218] sm:$0xff]
    %v147 = vld [vmem:[#allocation2 + $0x220] sm:$0xff]
    %v148 = vld [vmem:[#allocation2 + $0x228] sm:$0xff]
    %v149 = vld [vmem:[#allocation2 + $0x230] sm:$0xff]
    %v150 = vld [vmem:[#allocation2 + $0x238] sm:$0xff]
    %v151 = vld [vmem:[#allocation2 + $0x240] sm:$0xff]
    %v152 = vld [vmem:[#allocation2 + $0x248] sm:$0xff]
    %v153 = vld [vmem:[#allocation2 + $0x250] sm:$0xff]
    %v154 = vld [vmem:[#allocation2 + $0x258] sm:$0xff]
    %v155 = vld [vmem:[#allocation2 + $0x260] sm:$0xff]
    %v156 = vld [vmem:[#allocation2 + $0x268] sm:$0xff]
    %v157 = vld [vmem:[#allocation2 + $0x270] sm:$0xff]
    %v158 = vld [vmem:[#allocation2 + $0x278] sm:$0xff]
    %v159 = vld [vmem:[#allocation2 + $0x280] sm:$0xff]
    %v160 = vld [vmem:[#allocation2 + $0x288] sm:$0xff]
    %v161 = vld [vmem:[#allocation2 + $0x290] sm:$0xff]
    %v162 = vld [vmem:[#allocation2 + $0x298] sm:$0xff]
    %v163 = vld [vmem:[#allocation2 + $0x2a0] sm:$0xff]
    %v164 = vld [vmem:[#allocation2 + $0x2a8] sm:$0xff]
    %v165 = vld [vmem:[#allocation2 + $0x2b0] sm:$0xff]
    %v166 = vld [vmem:[#allocation2 + $0x2b8] sm:$0xff]
    %v167 = vld [vmem:[#allocation2 + $0x2c0] sm:$0xff]
    %v168 = vld [vmem:[#allocation2 + $0x2c8] sm:$0xff]
    %v169 = vld [vmem:[#allocation2 + $0x2d0] sm:$0xff]
    %v170 = vld [vmem:[#allocation2 + $0x2d8] sm:$0xff]
    %v171 = vld [vmem:[#allocation2 + $0x2e0] sm:$0xff]
    %v172 = vld [vmem:[#allocation2 + $0x2e8] sm:$0xff]
    %v173 = vld [vmem:[#allocation2 + $0x2f0] sm:$0xff]
    %v174 = vld [vmem:[#allocation2 + $0x2f8] sm:$0xff]
    %s175 = scalar_lea.vmem [#allocation2], 768
    %v176 = vld [vmem:[%s175] sm:$0xff]
    %v177 = vld [vmem:[%s175 + $0x8] sm:$0xff]
    %v178 = vld [vmem:[%s175 + $0x10] sm:$0xff]
    %v179 = vld [vmem:[%s175 + $0x18] sm:$0xff]
    %v180 = vld [vmem:[%s175 + $0x20] sm:$0xff]
    %v181 = vld [vmem:[%s175 + $0x28] sm:$0xff]
    %v182 = vld [vmem:[%s175 + $0x30] sm:$0xff]
    %v183 = vld [vmem:[%s175 + $0x38] sm:$0xff]
    %v184 = vld [vmem:[%s175 + $0x40] sm:$0xff]
    %v185 = vld [vmem:[%s175 + $0x48] sm:$0xff]
    %v186 = vld [vmem:[%s175 + $0x50] sm:$0xff]
    %v187 = vld [vmem:[%s175 + $0x58] sm:$0xff]
    %v188 = vld [vmem:[%s175 + $0x60] sm:$0xff]
    %v189 = vld [vmem:[%s175 + $0x68] sm:$0xff]
    %v190 = vld [vmem:[%s175 + $0x70] sm:$0xff]
    %v191 = vld [vmem:[%s175 + $0x78] sm:$0xff]
    %v192 = vld [vmem:[%s175 + $0x80] sm:$0xff]
    %v193 = vld [vmem:[%s175 + $0x88] sm:$0xff]
    %v194 = vld [vmem:[%s175 + $0x90] sm:$0xff]
    %v195 = vld [vmem:[%s175 + $0x98] sm:$0xff]
    %v196 = vld [vmem:[%s175 + $0xa0] sm:$0xff]
    %v197 = vld [vmem:[%s175 + $0xa8] sm:$0xff]
    %v198 = vld [vmem:[%s175 + $0xb0] sm:$0xff]
    %v199 = vld [vmem:[%s175 + $0xb8] sm:$0xff]
    %v200 = vld [vmem:[%s175 + $0xc0] sm:$0xff]
    %v201 = vld [vmem:[%s175 + $0xc8] sm:$0xff]
    %v202 = vld [vmem:[%s175 + $0xd0] sm:$0xff]
    %v203 = vld [vmem:[%s175 + $0xd8] sm:$0xff]
    %v204 = vld [vmem:[%s175 + $0xe0] sm:$0xff]
    %v205 = vld [vmem:[%s175 + $0xe8] sm:$0xff]
    %v206 = vld [vmem:[%s175 + $0xf0] sm:$0xff]
    %v207 = vld [vmem:[%s175 + $0xf8] sm:$0xff]
    %v208 = vld [vmem:[%s175 + $0x100] sm:$0xff]
    %v209 = vld [vmem:[%s175 + $0x108] sm:$0xff]
    %v210 = vld [vmem:[%s175 + $0x110] sm:$0xff]
    %v211 = vld [vmem:[%s175 + $0x118] sm:$0xff]
    %v212 = vld [vmem:[%s175 + $0x120] sm:$0xff]
    %v213 = vld [vmem:[%s175 + $0x128] sm:$0xff]
    %v214 = vld [vmem:[%s175 + $0x130] sm:$0xff]
    %v215 = vld [vmem:[%s175 + $0x138] sm:$0xff]
    %v216 = vld [vmem:[%s175 + $0x140] sm:$0xff]
    %v217 = vld [vmem:[%s175 + $0x148] sm:$0xff]
    %v218 = vld [vmem:[%s175 + $0x150] sm:$0xff]
    %v219 = vld [vmem:[%s175 + $0x158] sm:$0xff]
    %v220 = vld [vmem:[%s175 + $0x160] sm:$0xff]
    %v221 = vld [vmem:[%s175 + $0x168] sm:$0xff]
    %v222 = vld [vmem:[%s175 + $0x170] sm:$0xff]
    %v223 = vld [vmem:[%s175 + $0x178] sm:$0xff]
    %v224 = vld [vmem:[%s175 + $0x180] sm:$0xff]
    %v225 = vld [vmem:[%s175 + $0x188] sm:$0xff]
    %v226 = vld [vmem:[%s175 + $0x190] sm:$0xff]
    %v227 = vld [vmem:[%s175 + $0x198] sm:$0xff]
    %v228 = vld [vmem:[%s175 + $0x1a0] sm:$0xff]
    %v229 = vld [vmem:[%s175 + $0x1a8] sm:$0xff]
    %v230 = vld [vmem:[%s175 + $0x1b0] sm:$0xff]
    %v231 = vld [vmem:[%s175 + $0x1b8] sm:$0xff]
    %v232 = vld [vmem:[%s175 + $0x1c0] sm:$0xff]
    %v233 = vld [vmem:[%s175 + $0x1c8] sm:$0xff]
    %v234 = vld [vmem:[%s175 + $0x1d0] sm:$0xff]
    %v235 = vld [vmem:[%s175 + $0x1d8] sm:$0xff]
    %v236 = vld [vmem:[%s175 + $0x1e0] sm:$0xff]
    %v237 = vld [vmem:[%s175 + $0x1e8] sm:$0xff]
    %v238 = vld [vmem:[%s175 + $0x1f0] sm:$0xff]
    %v239 = vld [vmem:[%s175 + $0x1f8] sm:$0xff]
    %v240 = vld [vmem:[%s175 + $0x200] sm:$0xff]
    %v241 = vld [vmem:[%s175 + $0x208] sm:$0xff]
    %v242 = vld [vmem:[%s175 + $0x210] sm:$0xff]
    %v243 = vld [vmem:[%s175 + $0x218] sm:$0xff]
    %v244 = vld [vmem:[%s175 + $0x220] sm:$0xff]
    %v245 = vld [vmem:[%s175 + $0x228] sm:$0xff]
    %v246 = vld [vmem:[%s175 + $0x230] sm:$0xff]
    %v247 = vld [vmem:[%s175 + $0x238] sm:$0xff]
    %v248 = vld [vmem:[%s175 + $0x240] sm:$0xff]
    %v249 = vld [vmem:[%s175 + $0x248] sm:$0xff]
    %v250 = vld [vmem:[%s175 + $0x250] sm:$0xff]
    %v251 = vld [vmem:[%s175 + $0x258] sm:$0xff]
    %v252 = vld [vmem:[%s175 + $0x260] sm:$0xff]
    %v253 = vld [vmem:[%s175 + $0x268] sm:$0xff]
    %v254 = vld [vmem:[%s175 + $0x270] sm:$0xff]
    %v255 = vld [vmem:[%s175 + $0x278] sm:$0xff]
    %v256 = vld [vmem:[%s175 + $0x280] sm:$0xff]
    %v257 = vld [vmem:[%s175 + $0x288] sm:$0xff]
    %v258 = vld [vmem:[%s175 + $0x290] sm:$0xff]
    %v259 = vld [vmem:[%s175 + $0x298] sm:$0xff]
    %v260 = vld [vmem:[%s175 + $0x2a0] sm:$0xff]
    %v261 = vld [vmem:[%s175 + $0x2a8] sm:$0xff]
    %v262 = vld [vmem:[%s175 + $0x2b0] sm:$0xff]
    %v263 = vld [vmem:[%s175 + $0x2b8] sm:$0xff]
    %v264 = vld [vmem:[%s175 + $0x2c0] sm:$0xff]
    %v265 = vld [vmem:[%s175 + $0x2c8] sm:$0xff]
    %v266 = vld [vmem:[%s175 + $0x2d0] sm:$0xff]
    %v267 = vld [vmem:[%s175 + $0x2d8] sm:$0xff]
    %v268 = vld [vmem:[%s175 + $0x2e0] sm:$0xff]
    %v269 = vld [vmem:[%s175 + $0x2e8] sm:$0xff]
    %v270 = vld [vmem:[%s175 + $0x2f0] sm:$0xff]
    %v271 = vld [vmem:[%s175 + $0x2f8] sm:$0xff]
    %v274 = vunpack.c.l.b16 %v77
    %v275 = vunpack.c.h.b16 %v77
    %v276 = vunpack.c.l.b16 %v78
    %v277 = vpack.c.b16 %v274, %v274
    %v278 = vpack.c.b16 %v275, %v275
    %v279 = vpack.c.b16 %v276, %v276
    %v379 = vunpack.c.l.b16 %v176
    %v380 = vunpack.c.h.b16 %v176
    %v381 = vunpack.c.l.b16 %v177
    %v382 = vunpack.c.h.b16 %v177
    %v383 = vunpack.c.l.b16 %v178
    %v384 = vunpack.c.h.b16 %v178
    %v385 = vunpack.c.l.b16 %v179
    %v386 = vunpack.c.h.b16 %v179
    %v387 = vunpack.c.l.b16 %v180
    %v388 = vunpack.c.h.b16 %v180
    %v389 = vunpack.c.l.b16 %v181
    %v390 = vunpack.c.h.b16 %v181
    %v391 = vunpack.c.l.b16 %v182
    %v392 = vunpack.c.h.b16 %v182
    %v393 = vunpack.c.l.b16 %v183
    %v394 = vunpack.c.h.b16 %v183
    %v395 = vunpack.c.l.b16 %v184
    %v396 = vunpack.c.h.b16 %v184
    %v397 = vunpack.c.l.b16 %v185
    %v398 = vunpack.c.h.b16 %v185
    %v399 = vunpack.c.l.b16 %v186
    %v400 = vunpack.c.h.b16 %v186
    %v401 = vunpack.c.l.b16 %v187
    %v402 = vunpack.c.h.b16 %v187
    %v403 = vunpack.c.l.b16 %v188
    %v404 = vunpack.c.h.b16 %v188
    %v405 = vunpack.c.l.b16 %v189
    %v406 = vunpack.c.h.b16 %v189
    %v407 = vunpack.c.l.b16 %v190
    %v408 = vunpack.c.h.b16 %v190
    %v409 = vunpack.c.l.b16 %v191
    %v410 = vunpack.c.h.b16 %v191
    %v411 = vunpack.c.l.b16 %v192
    %v412 = vunpack.c.h.b16 %v192
    %v413 = vunpack.c.l.b16 %v193
    %v414 = vunpack.c.h.b16 %v193
    %v415 = vunpack.c.l.b16 %v194
    %v416 = vunpack.c.h.b16 %v194
    %v417 = vunpack.c.l.b16 %v195
    %v418 = vunpack.c.h.b16 %v195
    %v419 = vunpack.c.l.b16 %v196
    %v420 = vunpack.c.h.b16 %v196
    %v421 = vunpack.c.l.b16 %v197
    %v422 = vunpack.c.h.b16 %v197
    %v423 = vunpack.c.l.b16 %v198
    %v424 = vunpack.c.h.b16 %v198
    %v425 = vunpack.c.l.b16 %v199
    %v426 = vunpack.c.h.b16 %v199
    %v427 = vunpack.c.l.b16 %v200
    %v428 = vunpack.c.h.b16 %v200
    %v429 = vunpack.c.l.b16 %v201
    %v430 = vunpack.c.h.b16 %v201
    %v431 = vunpack.c.l.b16 %v202
    %v432 = vunpack.c.h.b16 %v202
    %v433 = vunpack.c.l.b16 %v203
    %v434 = vunpack.c.h.b16 %v203
    %v435 = vunpack.c.l.b16 %v204
    %v436 = vunpack.c.h.b16 %v204
    %v437 = vunpack.c.l.b16 %v205
    %v438 = vunpack.c.h.b16 %v205
    %v439 = vunpack.c.l.b16 %v206
    %v440 = vunpack.c.h.b16 %v206
    %v441 = vunpack.c.l.b16 %v207
    %v442 = vunpack.c.h.b16 %v207
    %v443 = vunpack.c.l.b16 %v208
    %v444 = vunpack.c.h.b16 %v208
    %v445 = vunpack.c.l.b16 %v209
    %v446 = vunpack.c.h.b16 %v209
    %v447 = vunpack.c.l.b16 %v210
    %v448 = vunpack.c.h.b16 %v210
    %v449 = vunpack.c.l.b16 %v211
    %v450 = vunpack.c.h.b16 %v211
    %v451 = vunpack.c.l.b16 %v212
    %v452 = vunpack.c.h.b16 %v212
    %v453 = vunpack.c.l.b16 %v213
    %v454 = vunpack.c.h.b16 %v213
    %v455 = vunpack.c.l.b16 %v214
    %v456 = vunpack.c.h.b16 %v214
    %v457 = vunpack.c.l.b16 %v215
    %v458 = vunpack.c.h.b16 %v215
    %v459 = vunpack.c.l.b16 %v216
    %v460 = vunpack.c.h.b16 %v216
    %v461 = vunpack.c.l.b16 %v217
    %v462 = vunpack.c.h.b16 %v217
    %v463 = vunpack.c.l.b16 %v218
    %v464 = vunpack.c.h.b16 %v218
    %v465 = vunpack.c.l.b16 %v219
    %v466 = vunpack.c.h.b16 %v219
    %v467 = vunpack.c.l.b16 %v220
    %v468 = vunpack.c.h.b16 %v220
    %v469 = vunpack.c.l.b16 %v221
    %v470 = vunpack.c.h.b16 %v221
    %v471 = vunpack.c.l.b16 %v222
    %v472 = vunpack.c.h.b16 %v222
    %v473 = vunpack.c.l.b16 %v223
    %v474 = vunpack.c.h.b16 %v223
    %v475 = vunpack.c.l.b16 %v224
    %v476 = vunpack.c.h.b16 %v224
    %v477 = vunpack.c.l.b16 %v225
    %v478 = vunpack.c.h.b16 %v225
    %v479 = vunpack.c.l.b16 %v226
    %v480 = vunpack.c.h.b16 %v226
    %v481 = vunpack.c.l.b16 %v227
    %v482 = vunpack.c.h.b16 %v227
    %v483 = vunpack.c.l.b16 %v228
    %v484 = vunpack.c.h.b16 %v228
    %v485 = vunpack.c.l.b16 %v229
    %v486 = vunpack.c.h.b16 %v229
    %v487 = vunpack.c.l.b16 %v230
    %v488 = vunpack.c.h.b16 %v230
    %v489 = vunpack.c.l.b16 %v231
    %v490 = vunpack.c.h.b16 %v231
    %v491 = vunpack.c.l.b16 %v232
    %v492 = vunpack.c.h.b16 %v232
    %v493 = vunpack.c.l.b16 %v233
    %v494 = vunpack.c.h.b16 %v233
    %v495 = vunpack.c.l.b16 %v234
    %v496 = vunpack.c.h.b16 %v234
    %v497 = vunpack.c.l.b16 %v235
    %v498 = vunpack.c.h.b16 %v235
    %v499 = vunpack.c.l.b16 %v236
    %v500 = vunpack.c.h.b16 %v236
    %v501 = vunpack.c.l.b16 %v237
    %v502 = vunpack.c.h.b16 %v237
    %v503 = vunpack.c.l.b16 %v238
    %v504 = vunpack.c.h.b16 %v238
    %v505 = vunpack.c.l.b16 %v239
    %v506 = vunpack.c.h.b16 %v239
    %v507 = vunpack.c.l.b16 %v240
    %v508 = vunpack.c.h.b16 %v240
    %v509 = vunpack.c.l.b16 %v241
    %v510 = vunpack.c.h.b16 %v241
    %v511 = vunpack.c.l.b16 %v242
    %v512 = vunpack.c.h.b16 %v242
    %v513 = vunpack.c.l.b16 %v243
    %v514 = vunpack.c.h.b16 %v243
    %v515 = vunpack.c.l.b16 %v244
    %v516 = vunpack.c.h.b16 %v244
    %v517 = vunpack.c.l.b16 %v245
    %v518 = vunpack.c.h.b16 %v245
    %v519 = vunpack.c.l.b16 %v246
    %v520 = vunpack.c.h.b16 %v246
    %v521 = vunpack.c.l.b16 %v247
    %v522 = vunpack.c.h.b16 %v247
    %v523 = vunpack.c.l.b16 %v248
    %v524 = vunpack.c.h.b16 %v248
    %v525 = vunpack.c.l.b16 %v249
    %v526 = vunpack.c.h.b16 %v249
    %v527 = vunpack.c.l.b16 %v250
    %v528 = vunpack.c.h.b16 %v250
    %v529 = vunpack.c.l.b16 %v251
    %v530 = vunpack.c.h.b16 %v251
    %v531 = vunpack.c.l.b16 %v252
    %v532 = vunpack.c.h.b16 %v252
    %v533 = vunpack.c.l.b16 %v253
    %v534 = vunpack.c.h.b16 %v253
    %v535 = vunpack.c.l.b16 %v254
    %v536 = vunpack.c.h.b16 %v254
    %v537 = vunpack.c.l.b16 %v255
    %v538 = vunpack.c.h.b16 %v255
    %v539 = vunpack.c.l.b16 %v256
    %v540 = vunpack.c.h.b16 %v256
    %v541 = vunpack.c.l.b16 %v257
    %v542 = vunpack.c.h.b16 %v257
    %v543 = vunpack.c.l.b16 %v258
    %v544 = vunpack.c.h.b16 %v258
    %v545 = vunpack.c.l.b16 %v259
    %v546 = vunpack.c.h.b16 %v259
    %v547 = vunpack.c.l.b16 %v260
    %v548 = vunpack.c.h.b16 %v260
    %v549 = vunpack.c.l.b16 %v261
    %v550 = vunpack.c.h.b16 %v261
    %v551 = vunpack.c.l.b16 %v262
    %v552 = vunpack.c.h.b16 %v262
    %v553 = vunpack.c.l.b16 %v263
    %v554 = vunpack.c.h.b16 %v263
    %v555 = vunpack.c.l.b16 %v264
    %v556 = vunpack.c.h.b16 %v264
    %v557 = vunpack.c.l.b16 %v265
    %v558 = vunpack.c.h.b16 %v265
    %v559 = vunpack.c.l.b16 %v266
    %v560 = vunpack.c.h.b16 %v266
    %v561 = vunpack.c.l.b16 %v267
    %v562 = vunpack.c.h.b16 %v267
    %v563 = vunpack.c.l.b16 %v268
    %v564 = vunpack.c.h.b16 %v268
    %v565 = vunpack.c.l.b16 %v269
    %v566 = vunpack.c.h.b16 %v269
    %v567 = vunpack.c.l.b16 %v270
    %v568 = vunpack.c.h.b16 %v270
    %v569 = vunpack.c.l.b16 %v271
    %v570 = vunpack.c.h.b16 %v271
    %v571 = vpack.c.b16 %v383, %v379
    %v572 = vpack.c.b16 %v384, %v380
    %v573 = vpack.c.b16 %v385, %v381
    %v574 = vpack.c.b16 %v386, %v382
    %v575 = vpack.c.b16 %v391, %v387
    %v576 = vpack.c.b16 %v392, %v388
    %v577 = vpack.c.b16 %v393, %v389
    %v578 = vpack.c.b16 %v394, %v390
    %v579 = vpack.c.b16 %v399, %v395
    %v580 = vpack.c.b16 %v400, %v396
    %v581 = vpack.c.b16 %v401, %v397
    %v582 = vpack.c.b16 %v402, %v398
    %v583 = vpack.c.b16 %v407, %v403
    %v584 = vpack.c.b16 %v408, %v404
    %v585 = vpack.c.b16 %v409, %v405
    %v586 = vpack.c.b16 %v410, %v406
    %v587 = vpack.c.b16 %v415, %v411
    %v588 = vpack.c.b16 %v416, %v412
    %v589 = vpack.c.b16 %v417, %v413
    %v590 = vpack.c.b16 %v418, %v414
    %v591 = vpack.c.b16 %v423, %v419
    %v592 = vpack.c.b16 %v424, %v420
    %v593 = vpack.c.b16 %v425, %v421
    %v594 = vpack.c.b16 %v426, %v422
    %v595 = vpack.c.b16 %v431, %v427
    %v596 = vpack.c.b16 %v432, %v428
    %v597 = vpack.c.b16 %v433, %v429
    %v598 = vpack.c.b16 %v434, %v430
    %v599 = vpack.c.b16 %v439, %v435
    %v600 = vpack.c.b16 %v440, %v436
    %v601 = vpack.c.b16 %v441, %v437
    %v602 = vpack.c.b16 %v442, %v438
    %v603 = vpack.c.b16 %v447, %v443
    %v604 = vpack.c.b16 %v448, %v444
    %v605 = vpack.c.b16 %v449, %v445
    %v606 = vpack.c.b16 %v450, %v446
    %v607 = vpack.c.b16 %v455, %v451
    %v608 = vpack.c.b16 %v456, %v452
    %v609 = vpack.c.b16 %v457, %v453
    %v610 = vpack.c.b16 %v458, %v454
    %v611 = vpack.c.b16 %v463, %v459
    %v612 = vpack.c.b16 %v464, %v460
    %v613 = vpack.c.b16 %v465, %v461
    %v614 = vpack.c.b16 %v466, %v462
    %v615 = vpack.c.b16 %v471, %v467
    %v616 = vpack.c.b16 %v472, %v468
    %v617 = vpack.c.b16 %v473, %v469
    %v618 = vpack.c.b16 %v474, %v470
    %v619 = vpack.c.b16 %v479, %v475
    %v620 = vpack.c.b16 %v480, %v476
    %v621 = vpack.c.b16 %v481, %v477
    %v622 = vpack.c.b16 %v482, %v478
    %v623 = vpack.c.b16 %v487, %v483
    %v624 = vpack.c.b16 %v488, %v484
    %v625 = vpack.c.b16 %v489, %v485
    %v626 = vpack.c.b16 %v490, %v486
    %v627 = vpack.c.b16 %v495, %v491
    %v628 = vpack.c.b16 %v496, %v492
    %v629 = vpack.c.b16 %v497, %v493
    %v630 = vpack.c.b16 %v498, %v494
    %v631 = vpack.c.b16 %v503, %v499
    %v632 = vpack.c.b16 %v504, %v500
    %v633 = vpack.c.b16 %v505, %v501
    %v634 = vpack.c.b16 %v506, %v502
    %v635 = vpack.c.b16 %v511, %v507
    %v636 = vpack.c.b16 %v512, %v508
    %v637 = vpack.c.b16 %v513, %v509
    %v638 = vpack.c.b16 %v514, %v510
    %v639 = vpack.c.b16 %v519, %v515
    %v640 = vpack.c.b16 %v520, %v516
    %v641 = vpack.c.b16 %v521, %v517
    %v642 = vpack.c.b16 %v522, %v518
    %v643 = vpack.c.b16 %v527, %v523
    %v644 = vpack.c.b16 %v528, %v524
    %v645 = vpack.c.b16 %v529, %v525
    %v646 = vpack.c.b16 %v530, %v526
    %v647 = vpack.c.b16 %v535, %v531
    %v648 = vpack.c.b16 %v536, %v532
    %v649 = vpack.c.b16 %v537, %v533
    %v650 = vpack.c.b16 %v538, %v534
    %v651 = vpack.c.b16 %v543, %v539
    %v652 = vpack.c.b16 %v544, %v540
    %v653 = vpack.c.b16 %v545, %v541
    %v654 = vpack.c.b16 %v546, %v542
    %v655 = vpack.c.b16 %v551, %v547
    %v656 = vpack.c.b16 %v552, %v548
    %v657 = vpack.c.b16 %v553, %v549
    %v658 = vpack.c.b16 %v554, %v550
    %v659 = vpack.c.b16 %v559, %v555
    %v660 = vpack.c.b16 %v560, %v556
    %v661 = vpack.c.b16 %v561, %v557
    %v662 = vpack.c.b16 %v562, %v558
    %v663 = vpack.c.b16 %v567, %v563
    %v664 = vpack.c.b16 %v568, %v564
    %v665 = vpack.c.b16 %v569, %v565
    %v666 = vpack.c.b16 %v570, %v566
    %763 = vmatprep.subr.bf16.mxu0 %v572
    %764 = vmatpush1.bf16.msra.mxu0 %v571
    %765 = vmatprep.subr.bf16.mxu0 %v576
    %766 = vmatpush1.bf16.msra.mxu0 %v575
    %767 = vmatprep.subr.bf16.mxu0 %v580
    %768 = vmatpush1.bf16.msra.mxu0 %v579
    %769 = vmatprep.subr.bf16.mxu0 %v584
    %770 = vmatpush1.bf16.msra.mxu0 %v583
    %771 = vmatprep.subr.bf16.mxu0 %v588
    %772 = vmatpush1.bf16.msra.mxu0 %v587
    %773 = vmatprep.subr.bf16.mxu0 %v592
    %774 = vmatpush1.bf16.msra.mxu0 %v591
    %775 = vmatprep.subr.bf16.mxu0 %v596
    %776 = vmatpush1.bf16.msra.mxu0 %v595
    %777 = vmatprep.subr.bf16.mxu0 %v600
    %778 = vmatpush1.bf16.msra.mxu0 %v599
    %779 = vmatprep.subr.bf16.mxu0 %v604
    %780 = vmatpush1.bf16.msra.mxu0 %v603
    %781 = vmatprep.subr.bf16.mxu0 %v608
    %782 = vmatpush1.bf16.msra.mxu0 %v607
    %783 = vmatprep.subr.bf16.mxu0 %v612
    %784 = vmatpush1.bf16.msra.mxu0 %v611
    %785 = vmatprep.subr.bf16.mxu0 %v616
    %786 = vmatpush1.bf16.msra.mxu0 %v615
    %787 = vmatprep.subr.bf16.mxu0 %v620
    %788 = vmatpush1.bf16.msra.mxu0 %v619
    %789 = vmatprep.subr.bf16.mxu0 %v624
    %790 = vmatpush1.bf16.msra.mxu0 %v623
    %791 = vmatprep.subr.bf16.mxu0 %v628
    %792 = vmatpush1.bf16.msra.mxu0 %v627
    %793 = vmatprep.subr.bf16.mxu0 %v632
    %794 = vmatpush1.bf16.msra.mxu0 %v631
    %795 = vmatprep.mubr.bf16.mxu0 %v278
    %796 = vmatmul.mubr.bf16.gmra.mrb[0].mxu0 %v277
    %v797 = vpop.f32.mrb[0].mxu0
    %v798 = vadd.f32 0.0, %v797
    %v799 = vpop.f32.mrb[0].mxu0
    %v800 = vadd.f32 0.0, %v799
    %v801 = vpop.f32.mrb[0].mxu0
    %v802 = vpop.f32.mrb[0].mxu0
    %803 = vdwg.mxu0
    %804 = vmatprep.subr.bf16.mxu0 %v636
    %805 = vmatpush1.bf16.msra.mxu0 %v635
    %806 = vmatprep.subr.bf16.mxu0 %v640
    %807 = vmatpush1.bf16.msra.mxu0 %v639
    %808 = vmatprep.subr.bf16.mxu0 %v644
    %809 = vmatpush1.bf16.msra.mxu0 %v643
    %810 = vmatprep.subr.bf16.mxu0 %v648
    %811 = vmatpush1.bf16.msra.mxu0 %v647
    %812 = vmatprep.subr.bf16.mxu0 %v652
    %813 = vmatpush1.bf16.msra.mxu0 %v651
    %814 = vmatprep.subr.bf16.mxu0 %v656
    %815 = vmatpush1.bf16.msra.mxu0 %v655
    %816 = vmatprep.subr.bf16.mxu0 %v660
    %817 = vmatpush1.bf16.msra.mxu0 %v659
    %818 = vmatprep.subr.bf16.mxu0 %v664
    %819 = vmatpush1.bf16.msra.mxu0 %v663
    %820 = vmatprep.subr.bf16.mxu0 0
    %821 = vmatpush1.bf16.msra.mxu0 0
    %822 = vmatprep.subr.bf16.mxu0 0
    %823 = vmatpush1.bf16.msra.mxu0 0
    %824 = vmatprep.subr.bf16.mxu0 0
    %825 = vmatpush1.bf16.msra.mxu0 0
    %826 = vmatprep.subr.bf16.mxu0 0
    %827 = vmatpush1.bf16.msra.mxu0 0
    %828 = vmatprep.subr.bf16.mxu0 0
    %829 = vmatpush1.bf16.msra.mxu0 0
    %830 = vmatprep.subr.bf16.mxu0 0
    %831 = vmatpush1.bf16.msra.mxu0 0
    %832 = vmatprep.subr.bf16.mxu0 0
    %833 = vmatpush1.bf16.msra.mxu0 0
    %834 = vmatprep.subr.bf16.mxu0 0
    %835 = vmatpush1.bf16.msra.mxu0 0
    %836 = vmatprep.mubr.bf16.mxu0 0
    %837 = vmatmul.mubr.bf16.gmra.mrb[0].mxu0 %v279
    %v838 = vpop.f32.mrb[0].mxu0
    %v839 = vadd.f32 %v798, %v838
    %v840 = vpop.f32.mrb[0].mxu0
    %v841 = vadd.f32 %v800, %v840
    %v842 = vpop.f32.mrb[0].mxu0
    %v843 = vpop.f32.mrb[0].mxu0
    %844 = vdwg.mxu0
    %845 = vmatprep.subr.bf16.mxu0 %v574
    %846 = vmatpush1.bf16.msra.mxu0 %v573
    %847 = vmatprep.subr.bf16.mxu0 %v578
    %848 = vmatpush1.bf16.msra.mxu0 %v577
    %849 = vmatprep.subr.bf16.mxu0 %v582
    %850 = vmatpush1.bf16.msra.mxu0 %v581
    %851 = vmatprep.subr.bf16.mxu0 %v586
    %852 = vmatpush1.bf16.msra.mxu0 %v585
    %853 = vmatprep.subr.bf16.mxu0 %v590
    %854 = vmatpush1.bf16.msra.mxu0 %v589
    %855 = vmatprep.subr.bf16.mxu0 %v594
    %856 = vmatpush1.bf16.msra.mxu0 %v593
    %857 = vmatprep.subr.bf16.mxu0 %v598
    %858 = vmatpush1.bf16.msra.mxu0 %v597
    %859 = vmatprep.subr.bf16.mxu0 %v602
    %860 = vmatpush1.bf16.msra.mxu0 %v601
    %861 = vmatprep.subr.bf16.mxu0 %v606
    %862 = vmatpush1.bf16.msra.mxu0 %v605
    %863 = vmatprep.subr.bf16.mxu0 %v610
    %864 = vmatpush1.bf16.msra.mxu0 %v609
    %865 = vmatprep.subr.bf16.mxu0 %v614
    %866 = vmatpush1.bf16.msra.mxu0 %v613
    %867 = vmatprep.subr.bf16.mxu0 %v618
    %868 = vmatpush1.bf16.msra.mxu0 %v617
    %869 = vmatprep.subr.bf16.mxu0 %v622
    %870 = vmatpush1.bf16.msra.mxu0 %v621
    %871 = vmatprep.subr.bf16.mxu0 %v626
    %872 = vmatpush1.bf16.msra.mxu0 %v625
    %873 = vmatprep.subr.bf16.mxu0 %v630
    %874 = vmatpush1.bf16.msra.mxu0 %v629
    %875 = vmatprep.subr.bf16.mxu0 %v634
    %876 = vmatpush1.bf16.msra.mxu0 %v633
    %877 = vmatprep.mubr.bf16.mxu0 %v278
    %878 = vmatmul.mubr.bf16.gmra.mrb[0].mxu0 %v277
    %v879 = vpop.f32.mrb[0].mxu0
    %v880 = vadd.f32 0.0, %v879
    %v881 = vpop.f32.mrb[0].mxu0
    %v882 = vadd.f32 0.0, %v881
    %v883 = vpop.f32.mrb[0].mxu0
    %v884 = vpop.f32.mrb[0].mxu0
    %885 = vdwg.mxu0
    %886 = vmatprep.subr.bf16.mxu0 %v638
    %887 = vmatpush1.bf16.msra.mxu0 %v637
    %888 = vmatprep.subr.bf16.mxu0 %v642
    %889 = vmatpush1.bf16.msra.mxu0 %v641
    %890 = vmatprep.subr.bf16.mxu0 %v646
    %891 = vmatpush1.bf16.msra.mxu0 %v645
    %892 = vmatprep.subr.bf16.mxu0 %v650
    %893 = vmatpush1.bf16.msra.mxu0 %v649
    %894 = vmatprep.subr.bf16.mxu0 %v654
    %895 = vmatpush1.bf16.msra.mxu0 %v653
    %896 = vmatprep.subr.bf16.mxu0 %v658
    %897 = vmatpush1.bf16.msra.mxu0 %v657
    %898 = vmatprep.subr.bf16.mxu0 %v662
    %899 = vmatpush1.bf16.msra.mxu0 %v661
    %900 = vmatprep.subr.bf16.mxu0 %v666
    %901 = vmatpush1.bf16.msra.mxu0 %v665
    %902 = vmatprep.subr.bf16.mxu0 0
    %903 = vmatpush1.bf16.msra.mxu0 0
    %904 = vmatprep.subr.bf16.mxu0 0
    %905 = vmatpush1.bf16.msra.mxu0 0
    %906 = vmatprep.subr.bf16.mxu0 0
    %907 = vmatpush1.bf16.msra.mxu0 0
    %908 = vmatprep.subr.bf16.mxu0 0
    %909 = vmatpush1.bf16.msra.mxu0 0
    %910 = vmatprep.subr.bf16.mxu0 0
    %911 = vmatpush1.bf16.msra.mxu0 0
    %912 = vmatprep.subr.bf16.mxu0 0
    %913 = vmatpush1.bf16.msra.mxu0 0
    %914 = vmatprep.subr.bf16.mxu0 0
    %915 = vmatpush1.bf16.msra.mxu0 0
    %916 = vmatprep.subr.bf16.mxu0 0
    %917 = vmatpush1.bf16.msra.mxu0 0
    %918 = vmatprep.mubr.bf16.mxu0 0
    %919 = vmatmul.mubr.bf16.gmra.mrb[0].mxu0 %v279
    %v920 = vpop.f32.mrb[0].mxu0
    %v921 = vadd.f32 %v880, %v920
    %v922 = vpop.f32.mrb[0].mxu0
    %v923 = vadd.f32 %v882, %v922
    %v924 = vpop.f32.mrb[0].mxu0
    %v925 = vpop.f32.mrb[0].mxu0
    %926 = vdwg.mxu0
    %v929 = vunpack.c.l.b16 %v75
    %v930 = vunpack.c.h.b16 %v75
    %v931 = vunpack.c.l.b16 %v76
    %v932 = vpack.c.b16 %v929, %v929
    %v933 = vpack.c.b16 %v930, %v930
    %v934 = vpack.c.b16 %v931, %v931
    %v1034 = vunpack.c.l.b16 %v79
    %v1035 = vunpack.c.h.b16 %v79
    %v1036 = vunpack.c.l.b16 %v80
    %v1037 = vunpack.c.h.b16 %v80
    %v1038 = vunpack.c.l.b16 %v81
    %v1039 = vunpack.c.h.b16 %v81
    %v1040 = vunpack.c.l.b16 %v82
    %v1041 = vunpack.c.h.b16 %v82
    %v1042 = vunpack.c.l.b16 %v83
    %v1043 = vunpack.c.h.b16 %v83
    %v1044 = vunpack.c.l.b16 %v84
    %v1045 = vunpack.c.h.b16 %v84
    %v1046 = vunpack.c.l.b16 %v85
    %v1047 = vunpack.c.h.b16 %v85
    %v1048 = vunpack.c.l.b16 %v86
    %v1049 = vunpack.c.h.b16 %v86
    %v1050 = vunpack.c.l.b16 %v87
    %v1051 = vunpack.c.h.b16 %v87
    %v1052 = vunpack.c.l.b16 %v88
    %v1053 = vunpack.c.h.b16 %v88
    %v1054 = vunpack.c.l.b16 %v89
    %v1055 = vunpack.c.h.b16 %v89
    %v1056 = vunpack.c.l.b16 %v90
    %v1057 = vunpack.c.h.b16 %v90
    %v1058 = vunpack.c.l.b16 %v91
    %v1059 = vunpack.c.h.b16 %v91
    %v1060 = vunpack.c.l.b16 %v92
    %v1061 = vunpack.c.h.b16 %v92
    %v1062 = vunpack.c.l.b16 %v93
    %v1063 = vunpack.c.h.b16 %v93
    %v1064 = vunpack.c.l.b16 %v94
    %v1065 = vunpack.c.h.b16 %v94
    %v1066 = vunpack.c.l.b16 %v95
    %v1067 = vunpack.c.h.b16 %v95
    %v1068 = vunpack.c.l.b16 %v96
    %v1069 = vunpack.c.h.b16 %v96
    %v1070 = vunpack.c.l.b16 %v97
    %v1071 = vunpack.c.h.b16 %v97
    %v1072 = vunpack.c.l.b16 %v98
    %v1073 = vunpack.c.h.b16 %v98
    %v1074 = vunpack.c.l.b16 %v99
    %v1075 = vunpack.c.h.b16 %v99
    %v1076 = vunpack.c.l.b16 %v100
    %v1077 = vunpack.c.h.b16 %v100
    %v1078 = vunpack.c.l.b16 %v101
    %v1079 = vunpack.c.h.b16 %v101
    %v1080 = vunpack.c.l.b16 %v102
    %v1081 = vunpack.c.h.b16 %v102
    %v1082 = vunpack.c.l.b16 %v103
    %v1083 = vunpack.c.h.b16 %v103
    %v1084 = vunpack.c.l.b16 %v104
    %v1085 = vunpack.c.h.b16 %v104
    %v1086 = vunpack.c.l.b16 %v105
    %v1087 = vunpack.c.h.b16 %v105
    %v1088 = vunpack.c.l.b16 %v106
    %v1089 = vunpack.c.h.b16 %v106
    %v1090 = vunpack.c.l.b16 %v107
    %v1091 = vunpack.c.h.b16 %v107
    %v1092 = vunpack.c.l.b16 %v108
    %v1093 = vunpack.c.h.b16 %v108
    %v1094 = vunpack.c.l.b16 %v109
    %v1095 = vunpack.c.h.b16 %v109
    %v1096 = vunpack.c.l.b16 %v110
    %v1097 = vunpack.c.h.b16 %v110
    %v1098 = vunpack.c.l.b16 %v111
    %v1099 = vunpack.c.h.b16 %v111
    %v1100 = vunpack.c.l.b16 %v112
    %v1101 = vunpack.c.h.b16 %v112
    %v1102 = vunpack.c.l.b16 %v113
    %v1103 = vunpack.c.h.b16 %v113
    %v1104 = vunpack.c.l.b16 %v114
    %v1105 = vunpack.c.h.b16 %v114
    %v1106 = vunpack.c.l.b16 %v115
    %v1107 = vunpack.c.h.b16 %v115
    %v1108 = vunpack.c.l.b16 %v116
    %v1109 = vunpack.c.h.b16 %v116
    %v1110 = vunpack.c.l.b16 %v117
    %v1111 = vunpack.c.h.b16 %v117
    %v1112 = vunpack.c.l.b16 %v118
    %v1113 = vunpack.c.h.b16 %v118
    %v1114 = vunpack.c.l.b16 %v119
    %v1115 = vunpack.c.h.b16 %v119
    %v1116 = vunpack.c.l.b16 %v120
    %v1117 = vunpack.c.h.b16 %v120
    %v1118 = vunpack.c.l.b16 %v121
    %v1119 = vunpack.c.h.b16 %v121
    %v1120 = vunpack.c.l.b16 %v122
    %v1121 = vunpack.c.h.b16 %v122
    %v1122 = vunpack.c.l.b16 %v123
    %v1123 = vunpack.c.h.b16 %v123
    %v1124 = vunpack.c.l.b16 %v124
    %v1125 = vunpack.c.h.b16 %v124
    %v1126 = vunpack.c.l.b16 %v125
    %v1127 = vunpack.c.h.b16 %v125
    %v1128 = vunpack.c.l.b16 %v126
    %v1129 = vunpack.c.h.b16 %v126
    %v1130 = vunpack.c.l.b16 %v127
    %v1131 = vunpack.c.h.b16 %v127
    %v1132 = vunpack.c.l.b16 %v128
    %v1133 = vunpack.c.h.b16 %v128
    %v1134 = vunpack.c.l.b16 %v129
    %v1135 = vunpack.c.h.b16 %v129
    %v1136 = vunpack.c.l.b16 %v130
    %v1137 = vunpack.c.h.b16 %v130
    %v1138 = vunpack.c.l.b16 %v131
    %v1139 = vunpack.c.h.b16 %v131
    %v1140 = vunpack.c.l.b16 %v132
    %v1141 = vunpack.c.h.b16 %v132
    %v1142 = vunpack.c.l.b16 %v133
    %v1143 = vunpack.c.h.b16 %v133
    %v1144 = vunpack.c.l.b16 %v134
    %v1145 = vunpack.c.h.b16 %v134
    %v1146 = vunpack.c.l.b16 %v135
    %v1147 = vunpack.c.h.b16 %v135
    %v1148 = vunpack.c.l.b16 %v136
    %v1149 = vunpack.c.h.b16 %v136
    %v1150 = vunpack.c.l.b16 %v137
    %v1151 = vunpack.c.h.b16 %v137
    %v1152 = vunpack.c.l.b16 %v138
    %v1153 = vunpack.c.h.b16 %v138
    %v1154 = vunpack.c.l.b16 %v139
    %v1155 = vunpack.c.h.b16 %v139
    %v1156 = vunpack.c.l.b16 %v140
    %v1157 = vunpack.c.h.b16 %v140
    %v1158 = vunpack.c.l.b16 %v141
    %v1159 = vunpack.c.h.b16 %v141
    %v1160 = vunpack.c.l.b16 %v142
    %v1161 = vunpack.c.h.b16 %v142
    %v1162 = vunpack.c.l.b16 %v143
    %v1163 = vunpack.c.h.b16 %v143
    %v1164 = vunpack.c.l.b16 %v144
    %v1165 = vunpack.c.h.b16 %v144
    %v1166 = vunpack.c.l.b16 %v145
    %v1167 = vunpack.c.h.b16 %v145
    %v1168 = vunpack.c.l.b16 %v146
    %v1169 = vunpack.c.h.b16 %v146
    %v1170 = vunpack.c.l.b16 %v147
    %v1171 = vunpack.c.h.b16 %v147
    %v1172 = vunpack.c.l.b16 %v148
    %v1173 = vunpack.c.h.b16 %v148
    %v1174 = vunpack.c.l.b16 %v149
    %v1175 = vunpack.c.h.b16 %v149
    %v1176 = vunpack.c.l.b16 %v150
    %v1177 = vunpack.c.h.b16 %v150
    %v1178 = vunpack.c.l.b16 %v151
    %v1179 = vunpack.c.h.b16 %v151
    %v1180 = vunpack.c.l.b16 %v152
    %v1181 = vunpack.c.h.b16 %v152
    %v1182 = vunpack.c.l.b16 %v153
    %v1183 = vunpack.c.h.b16 %v153
    %v1184 = vunpack.c.l.b16 %v154
    %v1185 = vunpack.c.h.b16 %v154
    %v1186 = vunpack.c.l.b16 %v155
    %v1187 = vunpack.c.h.b16 %v155
    %v1188 = vunpack.c.l.b16 %v156
    %v1189 = vunpack.c.h.b16 %v156
    %v1190 = vunpack.c.l.b16 %v157
    %v1191 = vunpack.c.h.b16 %v157
    %v1192 = vunpack.c.l.b16 %v158
    %v1193 = vunpack.c.h.b16 %v158
    %v1194 = vunpack.c.l.b16 %v159
    %v1195 = vunpack.c.h.b16 %v159
    %v1196 = vunpack.c.l.b16 %v160
    %v1197 = vunpack.c.h.b16 %v160
    %v1198 = vunpack.c.l.b16 %v161
    %v1199 = vunpack.c.h.b16 %v161
    %v1200 = vunpack.c.l.b16 %v162
    %v1201 = vunpack.c.h.b16 %v162
    %v1202 = vunpack.c.l.b16 %v163
    %v1203 = vunpack.c.h.b16 %v163
    %v1204 = vunpack.c.l.b16 %v164
    %v1205 = vunpack.c.h.b16 %v164
    %v1206 = vunpack.c.l.b16 %v165
    %v1207 = vunpack.c.h.b16 %v165
    %v1208 = vunpack.c.l.b16 %v166
    %v1209 = vunpack.c.h.b16 %v166
    %v1210 = vunpack.c.l.b16 %v167
    %v1211 = vunpack.c.h.b16 %v167
    %v1212 = vunpack.c.l.b16 %v168
    %v1213 = vunpack.c.h.b16 %v168
    %v1214 = vunpack.c.l.b16 %v169
    %v1215 = vunpack.c.h.b16 %v169
    %v1216 = vunpack.c.l.b16 %v170
    %v1217 = vunpack.c.h.b16 %v170
    %v1218 = vunpack.c.l.b16 %v171
    %v1219 = vunpack.c.h.b16 %v171
    %v1220 = vunpack.c.l.b16 %v172
    %v1221 = vunpack.c.h.b16 %v172
    %v1222 = vunpack.c.l.b16 %v173
    %v1223 = vunpack.c.h.b16 %v173
    %v1224 = vunpack.c.l.b16 %v174
    %v1225 = vunpack.c.h.b16 %v174
    %v1226 = vpack.c.b16 %v1038, %v1034
    %v1227 = vpack.c.b16 %v1039, %v1035
    %v1228 = vpack.c.b16 %v1040, %v1036
    %v1229 = vpack.c.b16 %v1041, %v1037
    %v1230 = vpack.c.b16 %v1046, %v1042
    %v1231 = vpack.c.b16 %v1047, %v1043
    %v1232 = vpack.c.b16 %v1048, %v1044
    %v1233 = vpack.c.b16 %v1049, %v1045
    %v1234 = vpack.c.b16 %v1054, %v1050
    %v1235 = vpack.c.b16 %v1055, %v1051
    %v1236 = vpack.c.b16 %v1056, %v1052
    %v1237 = vpack.c.b16 %v1057, %v1053
    %v1238 = vpack.c.b16 %v1062, %v1058
    %v1239 = vpack.c.b16 %v1063, %v1059
    %v1240 = vpack.c.b16 %v1064, %v1060
    %v1241 = vpack.c.b16 %v1065, %v1061
    %v1242 = vpack.c.b16 %v1070, %v1066
    %v1243 = vpack.c.b16 %v1071, %v1067
    %v1244 = vpack.c.b16 %v1072, %v1068
    %v1245 = vpack.c.b16 %v1073, %v1069
    %v1246 = vpack.c.b16 %v1078, %v1074
    %v1247 = vpack.c.b16 %v1079, %v1075
    %v1248 = vpack.c.b16 %v1080, %v1076
    %v1249 = vpack.c.b16 %v1081, %v1077
    %v1250 = vpack.c.b16 %v1086, %v1082
    %v1251 = vpack.c.b16 %v1087, %v1083
    %v1252 = vpack.c.b16 %v1088, %v1084
    %v1253 = vpack.c.b16 %v1089, %v1085
    %v1254 = vpack.c.b16 %v1094, %v1090
    %v1255 = vpack.c.b16 %v1095, %v1091
    %v1256 = vpack.c.b16 %v1096, %v1092
    %v1257 = vpack.c.b16 %v1097, %v1093
    %v1258 = vpack.c.b16 %v1102, %v1098
    %v1259 = vpack.c.b16 %v1103, %v1099
    %v1260 = vpack.c.b16 %v1104, %v1100
    %v1261 = vpack.c.b16 %v1105, %v1101
    %v1262 = vpack.c.b16 %v1110, %v1106
    %v1263 = vpack.c.b16 %v1111, %v1107
    %v1264 = vpack.c.b16 %v1112, %v1108
    %v1265 = vpack.c.b16 %v1113, %v1109
    %v1266 = vpack.c.b16 %v1118, %v1114
    %v1267 = vpack.c.b16 %v1119, %v1115
    %v1268 = vpack.c.b16 %v1120, %v1116
    %v1269 = vpack.c.b16 %v1121, %v1117
    %v1270 = vpack.c.b16 %v1126, %v1122
    %v1271 = vpack.c.b16 %v1127, %v1123
    %v1272 = vpack.c.b16 %v1128, %v1124
    %v1273 = vpack.c.b16 %v1129, %v1125
    %v1274 = vpack.c.b16 %v1134, %v1130
    %v1275 = vpack.c.b16 %v1135, %v1131
    %v1276 = vpack.c.b16 %v1136, %v1132
    %v1277 = vpack.c.b16 %v1137, %v1133
    %v1278 = vpack.c.b16 %v1142, %v1138
    %v1279 = vpack.c.b16 %v1143, %v1139
    %v1280 = vpack.c.b16 %v1144, %v1140
    %v1281 = vpack.c.b16 %v1145, %v1141
    %v1282 = vpack.c.b16 %v1150, %v1146
    %v1283 = vpack.c.b16 %v1151, %v1147
    %v1284 = vpack.c.b16 %v1152, %v1148
    %v1285 = vpack.c.b16 %v1153, %v1149
    %v1286 = vpack.c.b16 %v1158, %v1154
    %v1287 = vpack.c.b16 %v1159, %v1155
    %v1288 = vpack.c.b16 %v1160, %v1156
    %v1289 = vpack.c.b16 %v1161, %v1157
    %v1290 = vpack.c.b16 %v1166, %v1162
    %v1291 = vpack.c.b16 %v1167, %v1163
    %v1292 = vpack.c.b16 %v1168, %v1164
    %v1293 = vpack.c.b16 %v1169, %v1165
    %v1294 = vpack.c.b16 %v1174, %v1170
    %v1295 = vpack.c.b16 %v1175, %v1171
    %v1296 = vpack.c.b16 %v1176, %v1172
    %v1297 = vpack.c.b16 %v1177, %v1173
    %v1298 = vpack.c.b16 %v1182, %v1178
    %v1299 = vpack.c.b16 %v1183, %v1179
    %v1300 = vpack.c.b16 %v1184, %v1180
    %v1301 = vpack.c.b16 %v1185, %v1181
    %v1302 = vpack.c.b16 %v1190, %v1186
    %v1303 = vpack.c.b16 %v1191, %v1187
    %v1304 = vpack.c.b16 %v1192, %v1188
    %v1305 = vpack.c.b16 %v1193, %v1189
    %v1306 = vpack.c.b16 %v1198, %v1194
    %v1307 = vpack.c.b16 %v1199, %v1195
    %v1308 = vpack.c.b16 %v1200, %v1196
    %v1309 = vpack.c.b16 %v1201, %v1197
    %v1310 = vpack.c.b16 %v1206, %v1202
    %v1311 = vpack.c.b16 %v1207, %v1203
    %v1312 = vpack.c.b16 %v1208, %v1204
    %v1313 = vpack.c.b16 %v1209, %v1205
    %v1314 = vpack.c.b16 %v1214, %v1210
    %v1315 = vpack.c.b16 %v1215, %v1211
    %v1316 = vpack.c.b16 %v1216, %v1212
    %v1317 = vpack.c.b16 %v1217, %v1213
    %v1318 = vpack.c.b16 %v1222, %v1218
    %v1319 = vpack.c.b16 %v1223, %v1219
    %v1320 = vpack.c.b16 %v1224, %v1220
    %v1321 = vpack.c.b16 %v1225, %v1221
    %1418 = vmatprep.subr.bf16.mxu0 %v1227
    %1419 = vmatpush1.bf16.msra.mxu0 %v1226
    %1420 = vmatprep.subr.bf16.mxu0 %v1231
    %1421 = vmatpush1.bf16.msra.mxu0 %v1230
    %1422 = vmatprep.subr.bf16.mxu0 %v1235
    %1423 = vmatpush1.bf16.msra.mxu0 %v1234
    %1424 = vmatprep.subr.bf16.mxu0 %v1239
    %1425 = vmatpush1.bf16.msra.mxu0 %v1238
    %1426 = vmatprep.subr.bf16.mxu0 %v1243
    %1427 = vmatpush1.bf16.msra.mxu0 %v1242
    %1428 = vmatprep.subr.bf16.mxu0 %v1247
    %1429 = vmatpush1.bf16.msra.mxu0 %v1246
    %1430 = vmatprep.subr.bf16.mxu0 %v1251
    %1431 = vmatpush1.bf16.msra.mxu0 %v1250
    %1432 = vmatprep.subr.bf16.mxu0 %v1255
    %1433 = vmatpush1.bf16.msra.mxu0 %v1254
    %1434 = vmatprep.subr.bf16.mxu0 %v1259
    %1435 = vmatpush1.bf16.msra.mxu0 %v1258
    %1436 = vmatprep.subr.bf16.mxu0 %v1263
    %1437 = vmatpush1.bf16.msra.mxu0 %v1262
    %1438 = vmatprep.subr.bf16.mxu0 %v1267
    %1439 = vmatpush1.bf16.msra.mxu0 %v1266
    %1440 = vmatprep.subr.bf16.mxu0 %v1271
    %1441 = vmatpush1.bf16.msra.mxu0 %v1270
    %1442 = vmatprep.subr.bf16.mxu0 %v1275
    %1443 = vmatpush1.bf16.msra.mxu0 %v1274
    %1444 = vmatprep.subr.bf16.mxu0 %v1279
    %1445 = vmatpush1.bf16.msra.mxu0 %v1278
    %1446 = vmatprep.subr.bf16.mxu0 %v1283
    %1447 = vmatpush1.bf16.msra.mxu0 %v1282
    %1448 = vmatprep.subr.bf16.mxu0 %v1287
    %1449 = vmatpush1.bf16.msra.mxu0 %v1286
    %1450 = vmatprep.mubr.bf16.mxu0 %v933
    %1451 = vmatmul.mubr.bf16.gmra.mrb[0].mxu0 %v932
    %v1452 = vpop.f32.mrb[0].mxu0
    %v1453 = vadd.f32 %v839, %v1452
    %v1454 = vpop.f32.mrb[0].mxu0
    %v1455 = vadd.f32 %v841, %v1454
    %v1456 = vpop.f32.mrb[0].mxu0
    %v1457 = vpop.f32.mrb[0].mxu0
    %1458 = vdwg.mxu0
    %1459 = vmatprep.subr.bf16.mxu0 %v1291
    %1460 = vmatpush1.bf16.msra.mxu0 %v1290
    %1461 = vmatprep.subr.bf16.mxu0 %v1295
    %1462 = vmatpush1.bf16.msra.mxu0 %v1294
    %1463 = vmatprep.subr.bf16.mxu0 %v1299
    %1464 = vmatpush1.bf16.msra.mxu0 %v1298
    %1465 = vmatprep.subr.bf16.mxu0 %v1303
    %1466 = vmatpush1.bf16.msra.mxu0 %v1302
    %1467 = vmatprep.subr.bf16.mxu0 %v1307
    %1468 = vmatpush1.bf16.msra.mxu0 %v1306
    %1469 = vmatprep.subr.bf16.mxu0 %v1311
    %1470 = vmatpush1.bf16.msra.mxu0 %v1310
    %1471 = vmatprep.subr.bf16.mxu0 %v1315
    %1472 = vmatpush1.bf16.msra.mxu0 %v1314
    %1473 = vmatprep.subr.bf16.mxu0 %v1319
    %1474 = vmatpush1.bf16.msra.mxu0 %v1318
    %1475 = vmatprep.subr.bf16.mxu0 0
    %1476 = vmatpush1.bf16.msra.mxu0 0
    %1477 = vmatprep.subr.bf16.mxu0 0
    %1478 = vmatpush1.bf16.msra.mxu0 0
    %1479 = vmatprep.subr.bf16.mxu0 0
    %1480 = vmatpush1.bf16.msra.mxu0 0
    %1481 = vmatprep.subr.bf16.mxu0 0
    %1482 = vmatpush1.bf16.msra.mxu0 0
    %1483 = vmatprep.subr.bf16.mxu0 0
    %1484 = vmatpush1.bf16.msra.mxu0 0
    %1485 = vmatprep.subr.bf16.mxu0 0
    %1486 = vmatpush1.bf16.msra.mxu0 0
    %1487 = vmatprep.subr.bf16.mxu0 0
    %1488 = vmatpush1.bf16.msra.mxu0 0
    %1489 = vmatprep.subr.bf16.mxu0 0
    %1490 = vmatpush1.bf16.msra.mxu0 0
    %1491 = vmatprep.mubr.bf16.mxu0 0
    %1492 = vmatmul.mubr.bf16.gmra.mrb[0].mxu0 %v934
    %v1493 = vpop.f32.mrb[0].mxu0
    %v1494 = vadd.f32 %v1453, %v1493
    %v1495 = vpop.f32.mrb[0].mxu0
    %v1496 = vadd.f32 %v1455, %v1495
    %v1497 = vpop.f32.mrb[0].mxu0
    %v1498 = vpop.f32.mrb[0].mxu0
    %1499 = vdwg.mxu0
    %1500 = vmatprep.subr.bf16.mxu0 %v1229
    %1501 = vmatpush1.bf16.msra.mxu0 %v1228
    %1502 = vmatprep.subr.bf16.mxu0 %v1233
    %1503 = vmatpush1.bf16.msra.mxu0 %v1232
    %1504 = vmatprep.subr.bf16.mxu0 %v1237
    %1505 = vmatpush1.bf16.msra.mxu0 %v1236
    %1506 = vmatprep.subr.bf16.mxu0 %v1241
    %1507 = vmatpush1.bf16.msra.mxu0 %v1240
    %1508 = vmatprep.subr.bf16.mxu0 %v1245
    %1509 = vmatpush1.bf16.msra.mxu0 %v1244
    %1510 = vmatprep.subr.bf16.mxu0 %v1249
    %1511 = vmatpush1.bf16.msra.mxu0 %v1248
    %1512 = vmatprep.subr.bf16.mxu0 %v1253
    %1513 = vmatpush1.bf16.msra.mxu0 %v1252
    %1514 = vmatprep.subr.bf16.mxu0 %v1257
    %1515 = vmatpush1.bf16.msra.mxu0 %v1256
    %1516 = vmatprep.subr.bf16.mxu0 %v1261
    %1517 = vmatpush1.bf16.msra.mxu0 %v1260
    %1518 = vmatprep.subr.bf16.mxu0 %v1265
    %1519 = vmatpush1.bf16.msra.mxu0 %v1264
    %1520 = vmatprep.subr.bf16.mxu0 %v1269
    %1521 = vmatpush1.bf16.msra.mxu0 %v1268
    %1522 = vmatprep.subr.bf16.mxu0 %v1273
    %1523 = vmatpush1.bf16.msra.mxu0 %v1272
    %1524 = vmatprep.subr.bf16.mxu0 %v1277
    %1525 = vmatpush1.bf16.msra.mxu0 %v1276
    %1526 = vmatprep.subr.bf16.mxu0 %v1281
    %1527 = vmatpush1.bf16.msra.mxu0 %v1280
    %1528 = vmatprep.subr.bf16.mxu0 %v1285
    %1529 = vmatpush1.bf16.msra.mxu0 %v1284
    %1530 = vmatprep.subr.bf16.mxu0 %v1289
    %1531 = vmatpush1.bf16.msra.mxu0 %v1288
    %1532 = vmatprep.mubr.bf16.mxu0 %v933
    %1533 = vmatmul.mubr.bf16.gmra.mrb[0].mxu0 %v932
    %v1534 = vpop.f32.mrb[0].mxu0
    %v1535 = vadd.f32 %v921, %v1534
    %v1536 = vpop.f32.mrb[0].mxu0
    %v1537 = vadd.f32 %v923, %v1536
    %v1538 = vpop.f32.mrb[0].mxu0
    %v1539 = vpop.f32.mrb[0].mxu0
    %1540 = vdwg.mxu0
    %1541 = vmatprep.subr.bf16.mxu0 %v1293
    %1542 = vmatpush1.bf16.msra.mxu0 %v1292
    %1543 = vmatprep.subr.bf16.mxu0 %v1297
    %1544 = vmatpush1.bf16.msra.mxu0 %v1296
    %1545 = vmatprep.subr.bf16.mxu0 %v1301
    %1546 = vmatpush1.bf16.msra.mxu0 %v1300
    %1547 = vmatprep.subr.bf16.mxu0 %v1305
    %1548 = vmatpush1.bf16.msra.mxu0 %v1304
    %1549 = vmatprep.subr.bf16.mxu0 %v1309
    %1550 = vmatpush1.bf16.msra.mxu0 %v1308
    %1551 = vmatprep.subr.bf16.mxu0 %v1313
    %1552 = vmatpush1.bf16.msra.mxu0 %v1312
    %1553 = vmatprep.subr.bf16.mxu0 %v1317
    %1554 = vmatpush1.bf16.msra.mxu0 %v1316
    %1555 = vmatprep.subr.bf16.mxu0 %v1321
    %1556 = vmatpush1.bf16.msra.mxu0 %v1320
    %1557 = vmatprep.subr.bf16.mxu0 0
    %1558 = vmatpush1.bf16.msra.mxu0 0
    %1559 = vmatprep.subr.bf16.mxu0 0
    %1560 = vmatpush1.bf16.msra.mxu0 0
    %1561 = vmatprep.subr.bf16.mxu0 0
    %1562 = vmatpush1.bf16.msra.mxu0 0
    %1563 = vmatprep.subr.bf16.mxu0 0
    %1564 = vmatpush1.bf16.msra.mxu0 0
    %1565 = vmatprep.subr.bf16.mxu0 0
    %1566 = vmatpush1.bf16.msra.mxu0 0
    %1567 = vmatprep.subr.bf16.mxu0 0
    %1568 = vmatpush1.bf16.msra.mxu0 0
    %1569 = vmatprep.subr.bf16.mxu0 0
    %1570 = vmatpush1.bf16.msra.mxu0 0
    %1571 = vmatprep.subr.bf16.mxu0 0
    %1572 = vmatpush1.bf16.msra.mxu0 0
    %1573 = vmatprep.mubr.bf16.mxu0 0
    %1574 = vmatmul.mubr.bf16.gmra.mrb[0].mxu0 %v934
    %v1575 = vpop.f32.mrb[0].mxu0
    %v1576 = vadd.f32 %v1535, %v1575
    %v1577 = vpop.f32.mrb[0].mxu0
    %v1578 = vadd.f32 %v1537, %v1577
    %v1579 = vpop.f32.mrb[0].mxu0
    %v1580 = vpop.f32.mrb[0].mxu0
    %1581 = vdwg.mxu0
    %v1582 = vsub.bf16 %v75, %v77
    %v1583 = vsub.bf16 %v76, %v78
    %v1584 = vand.u32 2147450879, %v1582
    %v1585 = vand.u32 2147450879, %v1583
    %s1586 = scalar_lea.vmem [#allocation2], 1536
    %v1587 = vld [vmem:[%s1586] sm:$0xff]
    %v1588 = vld [vmem:[%s1586 + $0x8] sm:$0xff]
    %v1589 = vld [vmem:[%s1586 + $0x10] sm:$0xff]
    %v1590 = vld [vmem:[%s1586 + $0x18] sm:$0xff]
    %v1591 = vld [vmem:[%s1586 + $0x20] sm:$0xff]
    %v1592 = vld [vmem:[%s1586 + $0x28] sm:$0xff]
    %v1593 = vld [vmem:[%s1586 + $0x30] sm:$0xff]
    %v1594 = vld [vmem:[%s1586 + $0x38] sm:$0xff]
    %v1595 = vld [vmem:[%s1586 + $0x40] sm:$0xff]
    %v1596 = vld [vmem:[%s1586 + $0x48] sm:$0xff]
    %v1597 = vld [vmem:[%s1586 + $0x50] sm:$0xff]
    %v1598 = vld [vmem:[%s1586 + $0x58] sm:$0xff]
    %v1599 = vld [vmem:[%s1586 + $0x60] sm:$0xff]
    %v1600 = vld [vmem:[%s1586 + $0x68] sm:$0xff]
    %v1601 = vld [vmem:[%s1586 + $0x70] sm:$0xff]
    %v1602 = vld [vmem:[%s1586 + $0x78] sm:$0xff]
    %v1603 = vld [vmem:[%s1586 + $0x80] sm:$0xff]
    %v1604 = vld [vmem:[%s1586 + $0x88] sm:$0xff]
    %v1605 = vld [vmem:[%s1586 + $0x90] sm:$0xff]
    %v1606 = vld [vmem:[%s1586 + $0x98] sm:$0xff]
    %v1607 = vld [vmem:[%s1586 + $0xa0] sm:$0xff]
    %v1608 = vld [vmem:[%s1586 + $0xa8] sm:$0xff]
    %v1609 = vld [vmem:[%s1586 + $0xb0] sm:$0xff]
    %v1610 = vld [vmem:[%s1586 + $0xb8] sm:$0xff]
    %v1611 = vld [vmem:[%s1586 + $0xc0] sm:$0xff]
    %v1612 = vld [vmem:[%s1586 + $0xc8] sm:$0xff]
    %v1613 = vld [vmem:[%s1586 + $0xd0] sm:$0xff]
    %v1614 = vld [vmem:[%s1586 + $0xd8] sm:$0xff]
    %v1615 = vld [vmem:[%s1586 + $0xe0] sm:$0xff]
    %v1616 = vld [vmem:[%s1586 + $0xe8] sm:$0xff]
    %v1617 = vld [vmem:[%s1586 + $0xf0] sm:$0xff]
    %v1618 = vld [vmem:[%s1586 + $0xf8] sm:$0xff]
    %v1619 = vld [vmem:[%s1586 + $0x100] sm:$0xff]
    %v1620 = vld [vmem:[%s1586 + $0x108] sm:$0xff]
    %v1621 = vld [vmem:[%s1586 + $0x110] sm:$0xff]
    %v1622 = vld [vmem:[%s1586 + $0x118] sm:$0xff]
    %v1623 = vld [vmem:[%s1586 + $0x120] sm:$0xff]
    %v1624 = vld [vmem:[%s1586 + $0x128] sm:$0xff]
    %v1625 = vld [vmem:[%s1586 + $0x130] sm:$0xff]
    %v1626 = vld [vmem:[%s1586 + $0x138] sm:$0xff]
    %v1627 = vld [vmem:[%s1586 + $0x140] sm:$0xff]
    %v1628 = vld [vmem:[%s1586 + $0x148] sm:$0xff]
    %v1629 = vld [vmem:[%s1586 + $0x150] sm:$0xff]
    %v1630 = vld [vmem:[%s1586 + $0x158] sm:$0xff]
    %v1631 = vld [vmem:[%s1586 + $0x160] sm:$0xff]
    %v1632 = vld [vmem:[%s1586 + $0x168] sm:$0xff]
    %v1633 = vld [vmem:[%s1586 + $0x170] sm:$0xff]
    %v1634 = vld [vmem:[%s1586 + $0x178] sm:$0xff]
    %v1635 = vld [vmem:[%s1586 + $0x180] sm:$0xff]
    %v1636 = vld [vmem:[%s1586 + $0x188] sm:$0xff]
    %v1637 = vld [vmem:[%s1586 + $0x190] sm:$0xff]
    %v1638 = vld [vmem:[%s1586 + $0x198] sm:$0xff]
    %v1639 = vld [vmem:[%s1586 + $0x1a0] sm:$0xff]
    %v1640 = vld [vmem:[%s1586 + $0x1a8] sm:$0xff]
    %v1641 = vld [vmem:[%s1586 + $0x1b0] sm:$0xff]
    %v1642 = vld [vmem:[%s1586 + $0x1b8] sm:$0xff]
    %v1643 = vld [vmem:[%s1586 + $0x1c0] sm:$0xff]
    %v1644 = vld [vmem:[%s1586 + $0x1c8] sm:$0xff]
    %v1645 = vld [vmem:[%s1586 + $0x1d0] sm:$0xff]
    %v1646 = vld [vmem:[%s1586 + $0x1d8] sm:$0xff]
    %v1647 = vld [vmem:[%s1586 + $0x1e0] sm:$0xff]
    %v1648 = vld [vmem:[%s1586 + $0x1e8] sm:$0xff]
    %v1649 = vld [vmem:[%s1586 + $0x1f0] sm:$0xff]
    %v1650 = vld [vmem:[%s1586 + $0x1f8] sm:$0xff]
    %v1651 = vld [vmem:[%s1586 + $0x200] sm:$0xff]
    %v1652 = vld [vmem:[%s1586 + $0x208] sm:$0xff]
    %v1653 = vld [vmem:[%s1586 + $0x210] sm:$0xff]
    %v1654 = vld [vmem:[%s1586 + $0x218] sm:$0xff]
    %v1655 = vld [vmem:[%s1586 + $0x220] sm:$0xff]
    %v1656 = vld [vmem:[%s1586 + $0x228] sm:$0xff]
    %v1657 = vld [vmem:[%s1586 + $0x230] sm:$0xff]
    %v1658 = vld [vmem:[%s1586 + $0x238] sm:$0xff]
    %v1659 = vld [vmem:[%s1586 + $0x240] sm:$0xff]
    %v1660 = vld [vmem:[%s1586 + $0x248] sm:$0xff]
    %v1661 = vld [vmem:[%s1586 + $0x250] sm:$0xff]
    %v1662 = vld [vmem:[%s1586 + $0x258] sm:$0xff]
    %v1663 = vld [vmem:[%s1586 + $0x260] sm:$0xff]
    %v1664 = vld [vmem:[%s1586 + $0x268] sm:$0xff]
    %v1665 = vld [vmem:[%s1586 + $0x270] sm:$0xff]
    %v1666 = vld [vmem:[%s1586 + $0x278] sm:$0xff]
    %v1667 = vld [vmem:[%s1586 + $0x280] sm:$0xff]
    %v1668 = vld [vmem:[%s1586 + $0x288] sm:$0xff]
    %v1669 = vld [vmem:[%s1586 + $0x290] sm:$0xff]
    %v1670 = vld [vmem:[%s1586 + $0x298] sm:$0xff]
    %v1671 = vld [vmem:[%s1586 + $0x2a0] sm:$0xff]
    %v1672 = vld [vmem:[%s1586 + $0x2a8] sm:$0xff]
    %v1673 = vld [vmem:[%s1586 + $0x2b0] sm:$0xff]
    %v1674 = vld [vmem:[%s1586 + $0x2b8] sm:$0xff]
    %v1675 = vld [vmem:[%s1586 + $0x2c0] sm:$0xff]
    %v1676 = vld [vmem:[%s1586 + $0x2c8] sm:$0xff]
    %v1677 = vld [vmem:[%s1586 + $0x2d0] sm:$0xff]
    %v1678 = vld [vmem:[%s1586 + $0x2d8] sm:$0xff]
    %v1679 = vld [vmem:[%s1586 + $0x2e0] sm:$0xff]
    %v1680 = vld [vmem:[%s1586 + $0x2e8] sm:$0xff]
    %v1681 = vld [vmem:[%s1586 + $0x2f0] sm:$0xff]
    %v1682 = vld [vmem:[%s1586 + $0x2f8] sm:$0xff]
    %v1685 = vunpack.c.l.b16 %v1584
    %v1686 = vunpack.c.h.b16 %v1584
    %v1687 = vunpack.c.l.b16 %v1585
    %v1688 = vpack.c.b16 %v1685, %v1685
    %v1689 = vpack.c.b16 %v1686, %v1686
    %v1690 = vpack.c.b16 %v1687, %v1687
    %v1790 = vunpack.c.l.b16 %v1587
    %v1791 = vunpack.c.h.b16 %v1587
    %v1792 = vunpack.c.l.b16 %v1588
    %v1793 = vunpack.c.h.b16 %v1588
    %v1794 = vunpack.c.l.b16 %v1589
    %v1795 = vunpack.c.h.b16 %v1589
    %v1796 = vunpack.c.l.b16 %v1590
    %v1797 = vunpack.c.h.b16 %v1590
    %v1798 = vunpack.c.l.b16 %v1591
    %v1799 = vunpack.c.h.b16 %v1591
    %v1800 = vunpack.c.l.b16 %v1592
    %v1801 = vunpack.c.h.b16 %v1592
    %v1802 = vunpack.c.l.b16 %v1593
    %v1803 = vunpack.c.h.b16 %v1593
    %v1804 = vunpack.c.l.b16 %v1594
    %v1805 = vunpack.c.h.b16 %v1594
    %v1806 = vunpack.c.l.b16 %v1595
    %v1807 = vunpack.c.h.b16 %v1595
    %v1808 = vunpack.c.l.b16 %v1596
    %v1809 = vunpack.c.h.b16 %v1596
    %v1810 = vunpack.c.l.b16 %v1597
    %v1811 = vunpack.c.h.b16 %v1597
    %v1812 = vunpack.c.l.b16 %v1598
    %v1813 = vunpack.c.h.b16 %v1598
    %v1814 = vunpack.c.l.b16 %v1599
    %v1815 = vunpack.c.h.b16 %v1599
    %v1816 = vunpack.c.l.b16 %v1600
    %v1817 = vunpack.c.h.b16 %v1600
    %v1818 = vunpack.c.l.b16 %v1601
    %v1819 = vunpack.c.h.b16 %v1601
    %v1820 = vunpack.c.l.b16 %v1602
    %v1821 = vunpack.c.h.b16 %v1602
    %v1822 = vunpack.c.l.b16 %v1603
    %v1823 = vunpack.c.h.b16 %v1603
    %v1824 = vunpack.c.l.b16 %v1604
    %v1825 = vunpack.c.h.b16 %v1604
    %v1826 = vunpack.c.l.b16 %v1605
    %v1827 = vunpack.c.h.b16 %v1605
    %v1828 = vunpack.c.l.b16 %v1606
    %v1829 = vunpack.c.h.b16 %v1606
    %v1830 = vunpack.c.l.b16 %v1607
    %v1831 = vunpack.c.h.b16 %v1607
    %v1832 = vunpack.c.l.b16 %v1608
    %v1833 = vunpack.c.h.b16 %v1608
    %v1834 = vunpack.c.l.b16 %v1609
    %v1835 = vunpack.c.h.b16 %v1609
    %v1836 = vunpack.c.l.b16 %v1610
    %v1837 = vunpack.c.h.b16 %v1610
    %v1838 = vunpack.c.l.b16 %v1611
    %v1839 = vunpack.c.h.b16 %v1611
    %v1840 = vunpack.c.l.b16 %v1612
    %v1841 = vunpack.c.h.b16 %v1612
    %v1842 = vunpack.c.l.b16 %v1613
    %v1843 = vunpack.c.h.b16 %v1613
    %v1844 = vunpack.c.l.b16 %v1614
    %v1845 = vunpack.c.h.b16 %v1614
    %v1846 = vunpack.c.l.b16 %v1615
    %v1847 = vunpack.c.h.b16 %v1615
    %v1848 = vunpack.c.l.b16 %v1616
    %v1849 = vunpack.c.h.b16 %v1616
    %v1850 = vunpack.c.l.b16 %v1617
    %v1851 = vunpack.c.h.b16 %v1617
    %v1852 = vunpack.c.l.b16 %v1618
    %v1853 = vunpack.c.h.b16 %v1618
    %v1854 = vunpack.c.l.b16 %v1619
    %v1855 = vunpack.c.h.b16 %v1619
    %v1856 = vunpack.c.l.b16 %v1620
    %v1857 = vunpack.c.h.b16 %v1620
    %v1858 = vunpack.c.l.b16 %v1621
    %v1859 = vunpack.c.h.b16 %v1621
    %v1860 = vunpack.c.l.b16 %v1622
    %v1861 = vunpack.c.h.b16 %v1622
    %v1862 = vunpack.c.l.b16 %v1623
    %v1863 = vunpack.c.h.b16 %v1623
    %v1864 = vunpack.c.l.b16 %v1624
    %v1865 = vunpack.c.h.b16 %v1624
    %v1866 = vunpack.c.l.b16 %v1625
    %v1867 = vunpack.c.h.b16 %v1625
    %v1868 = vunpack.c.l.b16 %v1626
    %v1869 = vunpack.c.h.b16 %v1626
    %v1870 = vunpack.c.l.b16 %v1627
    %v1871 = vunpack.c.h.b16 %v1627
    %v1872 = vunpack.c.l.b16 %v1628
    %v1873 = vunpack.c.h.b16 %v1628
    %v1874 = vunpack.c.l.b16 %v1629
    %v1875 = vunpack.c.h.b16 %v1629
    %v1876 = vunpack.c.l.b16 %v1630
    %v1877 = vunpack.c.h.b16 %v1630
    %v1878 = vunpack.c.l.b16 %v1631
    %v1879 = vunpack.c.h.b16 %v1631
    %v1880 = vunpack.c.l.b16 %v1632
    %v1881 = vunpack.c.h.b16 %v1632
    %v1882 = vunpack.c.l.b16 %v1633
    %v1883 = vunpack.c.h.b16 %v1633
    %v1884 = vunpack.c.l.b16 %v1634
    %v1885 = vunpack.c.h.b16 %v1634
    %v1886 = vunpack.c.l.b16 %v1635
    %v1887 = vunpack.c.h.b16 %v1635
    %v1888 = vunpack.c.l.b16 %v1636
    %v1889 = vunpack.c.h.b16 %v1636
    %v1890 = vunpack.c.l.b16 %v1637
    %v1891 = vunpack.c.h.b16 %v1637
    %v1892 = vunpack.c.l.b16 %v1638
    %v1893 = vunpack.c.h.b16 %v1638
    %v1894 = vunpack.c.l.b16 %v1639
    %v1895 = vunpack.c.h.b16 %v1639
    %v1896 = vunpack.c.l.b16 %v1640
    %v1897 = vunpack.c.h.b16 %v1640
    %v1898 = vunpack.c.l.b16 %v1641
    %v1899 = vunpack.c.h.b16 %v1641
    %v1900 = vunpack.c.l.b16 %v1642
    %v1901 = vunpack.c.h.b16 %v1642
    %v1902 = vunpack.c.l.b16 %v1643
    %v1903 = vunpack.c.h.b16 %v1643
    %v1904 = vunpack.c.l.b16 %v1644
    %v1905 = vunpack.c.h.b16 %v1644
    %v1906 = vunpack.c.l.b16 %v1645
    %v1907 = vunpack.c.h.b16 %v1645
    %v1908 = vunpack.c.l.b16 %v1646
    %v1909 = vunpack.c.h.b16 %v1646
    %v1910 = vunpack.c.l.b16 %v1647
    %v1911 = vunpack.c.h.b16 %v1647
    %v1912 = vunpack.c.l.b16 %v1648
    %v1913 = vunpack.c.h.b16 %v1648
    %v1914 = vunpack.c.l.b16 %v1649
    %v1915 = vunpack.c.h.b16 %v1649
    %v1916 = vunpack.c.l.b16 %v1650
    %v1917 = vunpack.c.h.b16 %v1650
    %v1918 = vunpack.c.l.b16 %v1651
    %v1919 = vunpack.c.h.b16 %v1651
    %v1920 = vunpack.c.l.b16 %v1652
    %v1921 = vunpack.c.h.b16 %v1652
    %v1922 = vunpack.c.l.b16 %v1653
    %v1923 = vunpack.c.h.b16 %v1653
    %v1924 = vunpack.c.l.b16 %v1654
    %v1925 = vunpack.c.h.b16 %v1654
    %v1926 = vunpack.c.l.b16 %v1655
    %v1927 = vunpack.c.h.b16 %v1655
    %v1928 = vunpack.c.l.b16 %v1656
    %v1929 = vunpack.c.h.b16 %v1656
    %v1930 = vunpack.c.l.b16 %v1657
    %v1931 = vunpack.c.h.b16 %v1657
    %v1932 = vunpack.c.l.b16 %v1658
    %v1933 = vunpack.c.h.b16 %v1658
    %v1934 = vunpack.c.l.b16 %v1659
    %v1935 = vunpack.c.h.b16 %v1659
    %v1936 = vunpack.c.l.b16 %v1660
    %v1937 = vunpack.c.h.b16 %v1660
    %v1938 = vunpack.c.l.b16 %v1661
    %v1939 = vunpack.c.h.b16 %v1661
    %v1940 = vunpack.c.l.b16 %v1662
    %v1941 = vunpack.c.h.b16 %v1662
    %v1942 = vunpack.c.l.b16 %v1663
    %v1943 = vunpack.c.h.b16 %v1663
    %v1944 = vunpack.c.l.b16 %v1664
    %v1945 = vunpack.c.h.b16 %v1664
    %v1946 = vunpack.c.l.b16 %v1665
    %v1947 = vunpack.c.h.b16 %v1665
    %v1948 = vunpack.c.l.b16 %v1666
    %v1949 = vunpack.c.h.b16 %v1666
    %v1950 = vunpack.c.l.b16 %v1667
    %v1951 = vunpack.c.h.b16 %v1667
    %v1952 = vunpack.c.l.b16 %v1668
    %v1953 = vunpack.c.h.b16 %v1668
    %v1954 = vunpack.c.l.b16 %v1669
    %v1955 = vunpack.c.h.b16 %v1669
    %v1956 = vunpack.c.l.b16 %v1670
    %v1957 = vunpack.c.h.b16 %v1670
    %v1958 = vunpack.c.l.b16 %v1671
    %v1959 = vunpack.c.h.b16 %v1671
    %v1960 = vunpack.c.l.b16 %v1672
    %v1961 = vunpack.c.h.b16 %v1672
    %v1962 = vunpack.c.l.b16 %v1673
    %v1963 = vunpack.c.h.b16 %v1673
    %v1964 = vunpack.c.l.b16 %v1674
    %v1965 = vunpack.c.h.b16 %v1674
    %v1966 = vunpack.c.l.b16 %v1675
    %v1967 = vunpack.c.h.b16 %v1675
    %v1968 = vunpack.c.l.b16 %v1676
    %v1969 = vunpack.c.h.b16 %v1676
    %v1970 = vunpack.c.l.b16 %v1677
    %v1971 = vunpack.c.h.b16 %v1677
    %v1972 = vunpack.c.l.b16 %v1678
    %v1973 = vunpack.c.h.b16 %v1678
    %v1974 = vunpack.c.l.b16 %v1679
    %v1975 = vunpack.c.h.b16 %v1679
    %v1976 = vunpack.c.l.b16 %v1680
    %v1977 = vunpack.c.h.b16 %v1680
    %v1978 = vunpack.c.l.b16 %v1681
    %v1979 = vunpack.c.h.b16 %v1681
    %v1980 = vunpack.c.l.b16 %v1682
    %v1981 = vunpack.c.h.b16 %v1682
    %v1982 = vpack.c.b16 %v1794, %v1790
    %v1983 = vpack.c.b16 %v1795, %v1791
    %v1984 = vpack.c.b16 %v1796, %v1792
    %v1985 = vpack.c.b16 %v1797, %v1793
    %v1986 = vpack.c.b16 %v1802, %v1798
    %v1987 = vpack.c.b16 %v1803, %v1799
    %v1988 = vpack.c.b16 %v1804, %v1800
    %v1989 = vpack.c.b16 %v1805, %v1801
    %v1990 = vpack.c.b16 %v1810, %v1806
    %v1991 = vpack.c.b16 %v1811, %v1807
    %v1992 = vpack.c.b16 %v1812, %v1808
    %v1993 = vpack.c.b16 %v1813, %v1809
    %v1994 = vpack.c.b16 %v1818, %v1814
    %v1995 = vpack.c.b16 %v1819, %v1815
    %v1996 = vpack.c.b16 %v1820, %v1816
    %v1997 = vpack.c.b16 %v1821, %v1817
    %v1998 = vpack.c.b16 %v1826, %v1822
    %v1999 = vpack.c.b16 %v1827, %v1823
    %v2000 = vpack.c.b16 %v1828, %v1824
    %v2001 = vpack.c.b16 %v1829, %v1825
    %v2002 = vpack.c.b16 %v1834, %v1830
    %v2003 = vpack.c.b16 %v1835, %v1831
    %v2004 = vpack.c.b16 %v1836, %v1832
    %v2005 = vpack.c.b16 %v1837, %v1833
    %v2006 = vpack.c.b16 %v1842, %v1838
    %v2007 = vpack.c.b16 %v1843, %v1839
    %v2008 = vpack.c.b16 %v1844, %v1840
    %v2009 = vpack.c.b16 %v1845, %v1841
    %v2010 = vpack.c.b16 %v1850, %v1846
    %v2011 = vpack.c.b16 %v1851, %v1847
    %v2012 = vpack.c.b16 %v1852, %v1848
    %v2013 = vpack.c.b16 %v1853, %v1849
    %v2014 = vpack.c.b16 %v1858, %v1854
    %v2015 = vpack.c.b16 %v1859, %v1855
    %v2016 = vpack.c.b16 %v1860, %v1856
    %v2017 = vpack.c.b16 %v1861, %v1857
    %v2018 = vpack.c.b16 %v1866, %v1862
    %v2019 = vpack.c.b16 %v1867, %v1863
    %v2020 = vpack.c.b16 %v1868, %v1864
    %v2021 = vpack.c.b16 %v1869, %v1865
    %v2022 = vpack.c.b16 %v1874, %v1870
    %v2023 = vpack.c.b16 %v1875, %v1871
    %v2024 = vpack.c.b16 %v1876, %v1872
    %v2025 = vpack.c.b16 %v1877, %v1873
    %v2026 = vpack.c.b16 %v1882, %v1878
    %v2027 = vpack.c.b16 %v1883, %v1879
    %v2028 = vpack.c.b16 %v1884, %v1880
    %v2029 = vpack.c.b16 %v1885, %v1881
    %v2030 = vpack.c.b16 %v1890, %v1886
    %v2031 = vpack.c.b16 %v1891, %v1887
    %v2032 = vpack.c.b16 %v1892, %v1888
    %v2033 = vpack.c.b16 %v1893, %v1889
    %v2034 = vpack.c.b16 %v1898, %v1894
    %v2035 = vpack.c.b16 %v1899, %v1895
    %v2036 = vpack.c.b16 %v1900, %v1896
    %v2037 = vpack.c.b16 %v1901, %v1897
    %v2038 = vpack.c.b16 %v1906, %v1902
    %v2039 = vpack.c.b16 %v1907, %v1903
    %v2040 = vpack.c.b16 %v1908, %v1904
    %v2041 = vpack.c.b16 %v1909, %v1905
    %v2042 = vpack.c.b16 %v1914, %v1910
    %v2043 = vpack.c.b16 %v1915, %v1911
    %v2044 = vpack.c.b16 %v1916, %v1912
    %v2045 = vpack.c.b16 %v1917, %v1913
    %v2046 = vpack.c.b16 %v1922, %v1918
    %v2047 = vpack.c.b16 %v1923, %v1919
    %v2048 = vpack.c.b16 %v1924, %v1920
    %v2049 = vpack.c.b16 %v1925, %v1921
    %v2050 = vpack.c.b16 %v1930, %v1926
    %v2051 = vpack.c.b16 %v1931, %v1927
    %v2052 = vpack.c.b16 %v1932, %v1928
    %v2053 = vpack.c.b16 %v1933, %v1929
    %v2054 = vpack.c.b16 %v1938, %v1934
    %v2055 = vpack.c.b16 %v1939, %v1935
    %v2056 = vpack.c.b16 %v1940, %v1936
    %v2057 = vpack.c.b16 %v1941, %v1937
    %v2058 = vpack.c.b16 %v1946, %v1942
    %v2059 = vpack.c.b16 %v1947, %v1943
    %v2060 = vpack.c.b16 %v1948, %v1944
    %v2061 = vpack.c.b16 %v1949, %v1945
    %v2062 = vpack.c.b16 %v1954, %v1950
    %v2063 = vpack.c.b16 %v1955, %v1951
    %v2064 = vpack.c.b16 %v1956, %v1952
    %v2065 = vpack.c.b16 %v1957, %v1953
    %v2066 = vpack.c.b16 %v1962, %v1958
    %v2067 = vpack.c.b16 %v1963, %v1959
    %v2068 = vpack.c.b16 %v1964, %v1960
    %v2069 = vpack.c.b16 %v1965, %v1961
    %v2070 = vpack.c.b16 %v1970, %v1966
    %v2071 = vpack.c.b16 %v1971, %v1967
    %v2072 = vpack.c.b16 %v1972, %v1968
    %v2073 = vpack.c.b16 %v1973, %v1969
    %v2074 = vpack.c.b16 %v1978, %v1974
    %v2075 = vpack.c.b16 %v1979, %v1975
    %v2076 = vpack.c.b16 %v1980, %v1976
    %v2077 = vpack.c.b16 %v1981, %v1977
    %2174 = vmatprep.subr.bf16.mxu0 %v1983
    %2175 = vmatpush1.bf16.msra.mxu0 %v1982
    %2176 = vmatprep.subr.bf16.mxu0 %v1987
    %2177 = vmatpush1.bf16.msra.mxu0 %v1986
    %2178 = vmatprep.subr.bf16.mxu0 %v1991
    %2179 = vmatpush1.bf16.msra.mxu0 %v1990
    %2180 = vmatprep.subr.bf16.mxu0 %v1995
    %2181 = vmatpush1.bf16.msra.mxu0 %v1994
    %2182 = vmatprep.subr.bf16.mxu0 %v1999
    %2183 = vmatpush1.bf16.msra.mxu0 %v1998
    %2184 = vmatprep.subr.bf16.mxu0 %v2003
    %2185 = vmatpush1.bf16.msra.mxu0 %v2002
    %2186 = vmatprep.subr.bf16.mxu0 %v2007
    %2187 = vmatpush1.bf16.msra.mxu0 %v2006
    %2188 = vmatprep.subr.bf16.mxu0 %v2011
    %2189 = vmatpush1.bf16.msra.mxu0 %v2010
    %2190 = vmatprep.subr.bf16.mxu0 %v2015
    %2191 = vmatpush1.bf16.msra.mxu0 %v2014
    %2192 = vmatprep.subr.bf16.mxu0 %v2019
    %2193 = vmatpush1.bf16.msra.mxu0 %v2018
    %2194 = vmatprep.subr.bf16.mxu0 %v2023
    %2195 = vmatpush1.bf16.msra.mxu0 %v2022
    %2196 = vmatprep.subr.bf16.mxu0 %v2027
    %2197 = vmatpush1.bf16.msra.mxu0 %v2026
    %2198 = vmatprep.subr.bf16.mxu0 %v2031
    %2199 = vmatpush1.bf16.msra.mxu0 %v2030
    %2200 = vmatprep.subr.bf16.mxu0 %v2035
    %2201 = vmatpush1.bf16.msra.mxu0 %v2034
    %2202 = vmatprep.subr.bf16.mxu0 %v2039
    %2203 = vmatpush1.bf16.msra.mxu0 %v2038
    %2204 = vmatprep.subr.bf16.mxu0 %v2043
    %2205 = vmatpush1.bf16.msra.mxu0 %v2042
    %2206 = vmatprep.mubr.bf16.mxu0 %v1689
    %2207 = vmatmul.mubr.bf16.gmra.mrb[0].mxu0 %v1688
    %v2208 = vpop.f32.mrb[0].mxu0
    %v2209 = vadd.f32 0.0, %v2208
    %v2210 = vpop.f32.mrb[0].mxu0
    %v2211 = vadd.f32 0.0, %v2210
    %v2212 = vpop.f32.mrb[0].mxu0
    %v2213 = vpop.f32.mrb[0].mxu0
    %2214 = vdwg.mxu0
    %2215 = vmatprep.subr.bf16.mxu0 %v2047
    %2216 = vmatpush1.bf16.msra.mxu0 %v2046
    %2217 = vmatprep.subr.bf16.mxu0 %v2051
    %2218 = vmatpush1.bf16.msra.mxu0 %v2050
    %2219 = vmatprep.subr.bf16.mxu0 %v2055
    %2220 = vmatpush1.bf16.msra.mxu0 %v2054
    %2221 = vmatprep.subr.bf16.mxu0 %v2059
    %2222 = vmatpush1.bf16.msra.mxu0 %v2058
    %2223 = vmatprep.subr.bf16.mxu0 %v2063
    %2224 = vmatpush1.bf16.msra.mxu0 %v2062
    %2225 = vmatprep.subr.bf16.mxu0 %v2067
    %2226 = vmatpush1.bf16.msra.mxu0 %v2066
    %2227 = vmatprep.subr.bf16.mxu0 %v2071
    %2228 = vmatpush1.bf16.msra.mxu0 %v2070
    %2229 = vmatprep.subr.bf16.mxu0 %v2075
    %2230 = vmatpush1.bf16.msra.mxu0 %v2074
    %2231 = vmatprep.subr.bf16.mxu0 0
    %2232 = vmatpush1.bf16.msra.mxu0 0
    %2233 = vmatprep.subr.bf16.mxu0 0
    %2234 = vmatpush1.bf16.msra.mxu0 0
    %2235 = vmatprep.subr.bf16.mxu0 0
    %2236 = vmatpush1.bf16.msra.mxu0 0
    %2237 = vmatprep.subr.bf16.mxu0 0
    %2238 = vmatpush1.bf16.msra.mxu0 0
    %2239 = vmatprep.subr.bf16.mxu0 0
    %2240 = vmatpush1.bf16.msra.mxu0 0
    %2241 = vmatprep.subr.bf16.mxu0 0
    %2242 = vmatpush1.bf16.msra.mxu0 0
    %2243 = vmatprep.subr.bf16.mxu0 0
    %2244 = vmatpush1.bf16.msra.mxu0 0
    %2245 = vmatprep.subr.bf16.mxu0 0
    %2246 = vmatpush1.bf16.msra.mxu0 0
    %2247 = vmatprep.mubr.bf16.mxu0 0
    %2248 = vmatmul.mubr.bf16.gmra.mrb[0].mxu0 %v1690
    %v2249 = vpop.f32.mrb[0].mxu0
    %v2250 = vadd.f32 %v2209, %v2249
    %v2251 = vpop.f32.mrb[0].mxu0
    %v2252 = vadd.f32 %v2211, %v2251
    %v2253 = vpop.f32.mrb[0].mxu0
    %v2254 = vpop.f32.mrb[0].mxu0
    %2255 = vdwg.mxu0
    %2256 = vmatprep.subr.bf16.mxu0 %v1985
    %2257 = vmatpush1.bf16.msra.mxu0 %v1984
    %2258 = vmatprep.subr.bf16.mxu0 %v1989
    %2259 = vmatpush1.bf16.msra.mxu0 %v1988
    %2260 = vmatprep.subr.bf16.mxu0 %v1993
    %2261 = vmatpush1.bf16.msra.mxu0 %v1992
    %2262 = vmatprep.subr.bf16.mxu0 %v1997
    %2263 = vmatpush1.bf16.msra.mxu0 %v1996
    %2264 = vmatprep.subr.bf16.mxu0 %v2001
    %2265 = vmatpush1.bf16.msra.mxu0 %v2000
    %2266 = vmatprep.subr.bf16.mxu0 %v2005
    %2267 = vmatpush1.bf16.msra.mxu0 %v2004
    %2268 = vmatprep.subr.bf16.mxu0 %v2009
    %2269 = vmatpush1.bf16.msra.mxu0 %v2008
    %2270 = vmatprep.subr.bf16.mxu0 %v2013
    %2271 = vmatpush1.bf16.msra.mxu0 %v2012
    %2272 = vmatprep.subr.bf16.mxu0 %v2017
    %2273 = vmatpush1.bf16.msra.mxu0 %v2016
    %2274 = vmatprep.subr.bf16.mxu0 %v2021
    %2275 = vmatpush1.bf16.msra.mxu0 %v2020
    %2276 = vmatprep.subr.bf16.mxu0 %v2025
    %2277 = vmatpush1.bf16.msra.mxu0 %v2024
    %2278 = vmatprep.subr.bf16.mxu0 %v2029
    %2279 = vmatpush1.bf16.msra.mxu0 %v2028
    %2280 = vmatprep.subr.bf16.mxu0 %v2033
    %2281 = vmatpush1.bf16.msra.mxu0 %v2032
    %2282 = vmatprep.subr.bf16.mxu0 %v2037
    %2283 = vmatpush1.bf16.msra.mxu0 %v2036
    %2284 = vmatprep.subr.bf16.mxu0 %v2041
    %2285 = vmatpush1.bf16.msra.mxu0 %v2040
    %2286 = vmatprep.subr.bf16.mxu0 %v2045
    %2287 = vmatpush1.bf16.msra.mxu0 %v2044
    %2288 = vmatprep.mubr.bf16.mxu0 %v1689
    %2289 = vmatmul.mubr.bf16.gmra.mrb[0].mxu0 %v1688
    %v2290 = vpop.f32.mrb[0].mxu0
    %v2291 = vadd.f32 0.0, %v2290
    %v2292 = vpop.f32.mrb[0].mxu0
    %v2293 = vadd.f32 0.0, %v2292
    %v2294 = vpop.f32.mrb[0].mxu0
    %v2295 = vpop.f32.mrb[0].mxu0
    %2296 = vdwg.mxu0
    %2297 = vmatprep.subr.bf16.mxu0 %v2049
    %2298 = vmatpush1.bf16.msra.mxu0 %v2048
    %2299 = vmatprep.subr.bf16.mxu0 %v2053
    %2300 = vmatpush1.bf16.msra.mxu0 %v2052
    %2301 = vmatprep.subr.bf16.mxu0 %v2057
    %2302 = vmatpush1.bf16.msra.mxu0 %v2056
    %2303 = vmatprep.subr.bf16.mxu0 %v2061
    %2304 = vmatpush1.bf16.msra.mxu0 %v2060
    %2305 = vmatprep.subr.bf16.mxu0 %v2065
    %2306 = vmatpush1.bf16.msra.mxu0 %v2064
    %2307 = vmatprep.subr.bf16.mxu0 %v2069
    %2308 = vmatpush1.bf16.msra.mxu0 %v2068
    %2309 = vmatprep.subr.bf16.mxu0 %v2073
    %2310 = vmatpush1.bf16.msra.mxu0 %v2072
    %2311 = vmatprep.subr.bf16.mxu0 %v2077
    %2312 = vmatpush1.bf16.msra.mxu0 %v2076
    %2313 = vmatprep.subr.bf16.mxu0 0
    %2314 = vmatpush1.bf16.msra.mxu0 0
    %2315 = vmatprep.subr.bf16.mxu0 0
    %2316 = vmatpush1.bf16.msra.mxu0 0
    %2317 = vmatprep.subr.bf16.mxu0 0
    %2318 = vmatpush1.bf16.msra.mxu0 0
    %2319 = vmatprep.subr.bf16.mxu0 0
    %2320 = vmatpush1.bf16.msra.mxu0 0
    %2321 = vmatprep.subr.bf16.mxu0 0
    %2322 = vmatpush1.bf16.msra.mxu0 0
    %2323 = vmatprep.subr.bf16.mxu0 0
    %2324 = vmatpush1.bf16.msra.mxu0 0
    %2325 = vmatprep.subr.bf16.mxu0 0
    %2326 = vmatpush1.bf16.msra.mxu0 0
    %2327 = vmatprep.subr.bf16.mxu0 0
    %2328 = vmatpush1.bf16.msra.mxu0 0
    %2329 = vmatprep.mubr.bf16.mxu0 0
    %2330 = vmatmul.mubr.bf16.gmra.mrb[0].mxu0 %v1690
    %v2331 = vpop.f32.mrb[0].mxu0
    %v2332 = vadd.f32 %v2291, %v2331
    %v2333 = vpop.f32.mrb[0].mxu0
    %v2334 = vadd.f32 %v2293, %v2333
    %v2335 = vpop.f32.mrb[0].mxu0
    %v2336 = vpop.f32.mrb[0].mxu0
    %2337 = vdwg.mxu0
    %v2338 = vadd.f32 %v1494, %v2250
    %v2339 = vadd.f32 %v1496, %v2252
    %v2340 = vadd.f32 %v1576, %v2332
    %v2341 = vadd.f32 %v1578, %v2334
    %v2342 = vmul.bf16 %v75, %v77
    %v2343 = vmul.bf16 %v76, %v78
    %s2344 = scalar_lea.vmem [#allocation2], 2304
    %v2345 = vld [vmem:[%s2344] sm:$0xff]
    %v2346 = vld [vmem:[%s2344 + $0x8] sm:$0xff]
    %v2347 = vld [vmem:[%s2344 + $0x10] sm:$0xff]
    %v2348 = vld [vmem:[%s2344 + $0x18] sm:$0xff]
    %v2349 = vld [vmem:[%s2344 + $0x20] sm:$0xff]
    %v2350 = vld [vmem:[%s2344 + $0x28] sm:$0xff]
    %v2351 = vld [vmem:[%s2344 + $0x30] sm:$0xff]
    %v2352 = vld [vmem:[%s2344 + $0x38] sm:$0xff]
    %v2353 = vld [vmem:[%s2344 + $0x40] sm:$0xff]
    %v2354 = vld [vmem:[%s2344 + $0x48] sm:$0xff]
    %v2355 = vld [vmem:[%s2344 + $0x50] sm:$0xff]
    %v2356 = vld [vmem:[%s2344 + $0x58] sm:$0xff]
    %v2357 = vld [vmem:[%s2344 + $0x60] sm:$0xff]
    %v2358 = vld [vmem:[%s2344 + $0x68] sm:$0xff]
    %v2359 = vld [vmem:[%s2344 + $0x70] sm:$0xff]
    %v2360 = vld [vmem:[%s2344 + $0x78] sm:$0xff]
    %v2361 = vld [vmem:[%s2344 + $0x80] sm:$0xff]
    %v2362 = vld [vmem:[%s2344 + $0x88] sm:$0xff]
    %v2363 = vld [vmem:[%s2344 + $0x90] sm:$0xff]
    %v2364 = vld [vmem:[%s2344 + $0x98] sm:$0xff]
    %v2365 = vld [vmem:[%s2344 + $0xa0] sm:$0xff]
    %v2366 = vld [vmem:[%s2344 + $0xa8] sm:$0xff]
    %v2367 = vld [vmem:[%s2344 + $0xb0] sm:$0xff]
    %v2368 = vld [vmem:[%s2344 + $0xb8] sm:$0xff]
    %v2369 = vld [vmem:[%s2344 + $0xc0] sm:$0xff]
    %v2370 = vld [vmem:[%s2344 + $0xc8] sm:$0xff]
    %v2371 = vld [vmem:[%s2344 + $0xd0] sm:$0xff]
    %v2372 = vld [vmem:[%s2344 + $0xd8] sm:$0xff]
    %v2373 = vld [vmem:[%s2344 + $0xe0] sm:$0xff]
    %v2374 = vld [vmem:[%s2344 + $0xe8] sm:$0xff]
    %v2375 = vld [vmem:[%s2344 + $0xf0] sm:$0xff]
    %v2376 = vld [vmem:[%s2344 + $0xf8] sm:$0xff]
    %v2377 = vld [vmem:[%s2344 + $0x100] sm:$0xff]
    %v2378 = vld [vmem:[%s2344 + $0x108] sm:$0xff]
    %v2379 = vld [vmem:[%s2344 + $0x110] sm:$0xff]
    %v2380 = vld [vmem:[%s2344 + $0x118] sm:$0xff]
    %v2381 = vld [vmem:[%s2344 + $0x120] sm:$0xff]
    %v2382 = vld [vmem:[%s2344 + $0x128] sm:$0xff]
    %v2383 = vld [vmem:[%s2344 + $0x130] sm:$0xff]
    %v2384 = vld [vmem:[%s2344 + $0x138] sm:$0xff]
    %v2385 = vld [vmem:[%s2344 + $0x140] sm:$0xff]
    %v2386 = vld [vmem:[%s2344 + $0x148] sm:$0xff]
    %v2387 = vld [vmem:[%s2344 + $0x150] sm:$0xff]
    %v2388 = vld [vmem:[%s2344 + $0x158] sm:$0xff]
    %v2389 = vld [vmem:[%s2344 + $0x160] sm:$0xff]
    %v2390 = vld [vmem:[%s2344 + $0x168] sm:$0xff]
    %v2391 = vld [vmem:[%s2344 + $0x170] sm:$0xff]
    %v2392 = vld [vmem:[%s2344 + $0x178] sm:$0xff]
    %v2393 = vld [vmem:[%s2344 + $0x180] sm:$0xff]
    %v2394 = vld [vmem:[%s2344 + $0x188] sm:$0xff]
    %v2395 = vld [vmem:[%s2344 + $0x190] sm:$0xff]
    %v2396 = vld [vmem:[%s2344 + $0x198] sm:$0xff]
    %v2397 = vld [vmem:[%s2344 + $0x1a0] sm:$0xff]
    %v2398 = vld [vmem:[%s2344 + $0x1a8] sm:$0xff]
    %v2399 = vld [vmem:[%s2344 + $0x1b0] sm:$0xff]
    %v2400 = vld [vmem:[%s2344 + $0x1b8] sm:$0xff]
    %v2401 = vld [vmem:[%s2344 + $0x1c0] sm:$0xff]
    %v2402 = vld [vmem:[%s2344 + $0x1c8] sm:$0xff]
    %v2403 = vld [vmem:[%s2344 + $0x1d0] sm:$0xff]
    %v2404 = vld [vmem:[%s2344 + $0x1d8] sm:$0xff]
    %v2405 = vld [vmem:[%s2344 + $0x1e0] sm:$0xff]
    %v2406 = vld [vmem:[%s2344 + $0x1e8] sm:$0xff]
    %v2407 = vld [vmem:[%s2344 + $0x1f0] sm:$0xff]
    %v2408 = vld [vmem:[%s2344 + $0x1f8] sm:$0xff]
    %v2409 = vld [vmem:[%s2344 + $0x200] sm:$0xff]
    %v2410 = vld [vmem:[%s2344 + $0x208] sm:$0xff]
    %v2411 = vld [vmem:[%s2344 + $0x210] sm:$0xff]
    %v2412 = vld [vmem:[%s2344 + $0x218] sm:$0xff]
    %v2413 = vld [vmem:[%s2344 + $0x220] sm:$0xff]
    %v2414 = vld [vmem:[%s2344 + $0x228] sm:$0xff]
    %v2415 = vld [vmem:[%s2344 + $0x230] sm:$0xff]
    %v2416 = vld [vmem:[%s2344 + $0x238] sm:$0xff]
    %v2417 = vld [vmem:[%s2344 + $0x240] sm:$0xff]
    %v2418 = vld [vmem:[%s2344 + $0x248] sm:$0xff]
    %v2419 = vld [vmem:[%s2344 + $0x250] sm:$0xff]
    %v2420 = vld [vmem:[%s2344 + $0x258] sm:$0xff]
    %v2421 = vld [vmem:[%s2344 + $0x260] sm:$0xff]
    %v2422 = vld [vmem:[%s2344 + $0x268] sm:$0xff]
    %v2423 = vld [vmem:[%s2344 + $0x270] sm:$0xff]
    %v2424 = vld [vmem:[%s2344 + $0x278] sm:$0xff]
    %v2425 = vld [vmem:[%s2344 + $0x280] sm:$0xff]
    %v2426 = vld [vmem:[%s2344 + $0x288] sm:$0xff]
    %v2427 = vld [vmem:[%s2344 + $0x290] sm:$0xff]
    %v2428 = vld [vmem:[%s2344 + $0x298] sm:$0xff]
    %v2429 = vld [vmem:[%s2344 + $0x2a0] sm:$0xff]
    %v2430 = vld [vmem:[%s2344 + $0x2a8] sm:$0xff]
    %v2431 = vld [vmem:[%s2344 + $0x2b0] sm:$0xff]
    %v2432 = vld [vmem:[%s2344 + $0x2b8] sm:$0xff]
    %v2433 = vld [vmem:[%s2344 + $0x2c0] sm:$0xff]
    %v2434 = vld [vmem:[%s2344 + $0x2c8] sm:$0xff]
    %v2435 = vld [vmem:[%s2344 + $0x2d0] sm:$0xff]
    %v2436 = vld [vmem:[%s2344 + $0x2d8] sm:$0xff]
    %v2437 = vld [vmem:[%s2344 + $0x2e0] sm:$0xff]
    %v2438 = vld [vmem:[%s2344 + $0x2e8] sm:$0xff]
    %v2439 = vld [vmem:[%s2344 + $0x2f0] sm:$0xff]
    %v2440 = vld [vmem:[%s2344 + $0x2f8] sm:$0xff]
    %v2443 = vunpack.c.l.b16 %v2342
    %v2444 = vunpack.c.h.b16 %v2342
    %v2445 = vunpack.c.l.b16 %v2343
    %v2446 = vpack.c.b16 %v2443, %v2443
    %v2447 = vpack.c.b16 %v2444, %v2444
    %v2448 = vpack.c.b16 %v2445, %v2445
    %v2548 = vunpack.c.l.b16 %v2345
    %v2549 = vunpack.c.h.b16 %v2345
    %v2550 = vunpack.c.l.b16 %v2346
    %v2551 = vunpack.c.h.b16 %v2346
    %v2552 = vunpack.c.l.b16 %v2347
    %v2553 = vunpack.c.h.b16 %v2347
    %v2554 = vunpack.c.l.b16 %v2348
    %v2555 = vunpack.c.h.b16 %v2348
    %v2556 = vunpack.c.l.b16 %v2349
    %v2557 = vunpack.c.h.b16 %v2349
    %v2558 = vunpack.c.l.b16 %v2350
    %v2559 = vunpack.c.h.b16 %v2350
    %v2560 = vunpack.c.l.b16 %v2351
    %v2561 = vunpack.c.h.b16 %v2351
    %v2562 = vunpack.c.l.b16 %v2352
    %v2563 = vunpack.c.h.b16 %v2352
    %v2564 = vunpack.c.l.b16 %v2353
    %v2565 = vunpack.c.h.b16 %v2353
    %v2566 = vunpack.c.l.b16 %v2354
    %v2567 = vunpack.c.h.b16 %v2354
    %v2568 = vunpack.c.l.b16 %v2355
    %v2569 = vunpack.c.h.b16 %v2355
    %v2570 = vunpack.c.l.b16 %v2356
    %v2571 = vunpack.c.h.b16 %v2356
    %v2572 = vunpack.c.l.b16 %v2357
    %v2573 = vunpack.c.h.b16 %v2357
    %v2574 = vunpack.c.l.b16 %v2358
    %v2575 = vunpack.c.h.b16 %v2358
    %v2576 = vunpack.c.l.b16 %v2359
    %v2577 = vunpack.c.h.b16 %v2359
    %v2578 = vunpack.c.l.b16 %v2360
    %v2579 = vunpack.c.h.b16 %v2360
    %v2580 = vunpack.c.l.b16 %v2361
    %v2581 = vunpack.c.h.b16 %v2361
    %v2582 = vunpack.c.l.b16 %v2362
    %v2583 = vunpack.c.h.b16 %v2362
    %v2584 = vunpack.c.l.b16 %v2363
    %v2585 = vunpack.c.h.b16 %v2363
    %v2586 = vunpack.c.l.b16 %v2364
    %v2587 = vunpack.c.h.b16 %v2364
    %v2588 = vunpack.c.l.b16 %v2365
    %v2589 = vunpack.c.h.b16 %v2365
    %v2590 = vunpack.c.l.b16 %v2366
    %v2591 = vunpack.c.h.b16 %v2366
    %v2592 = vunpack.c.l.b16 %v2367
    %v2593 = vunpack.c.h.b16 %v2367
    %v2594 = vunpack.c.l.b16 %v2368
    %v2595 = vunpack.c.h.b16 %v2368
    %v2596 = vunpack.c.l.b16 %v2369
    %v2597 = vunpack.c.h.b16 %v2369
    %v2598 = vunpack.c.l.b16 %v2370
    %v2599 = vunpack.c.h.b16 %v2370
    %v2600 = vunpack.c.l.b16 %v2371
    %v2601 = vunpack.c.h.b16 %v2371
    %v2602 = vunpack.c.l.b16 %v2372
    %v2603 = vunpack.c.h.b16 %v2372
    %v2604 = vunpack.c.l.b16 %v2373
    %v2605 = vunpack.c.h.b16 %v2373
    %v2606 = vunpack.c.l.b16 %v2374
    %v2607 = vunpack.c.h.b16 %v2374
    %v2608 = vunpack.c.l.b16 %v2375
    %v2609 = vunpack.c.h.b16 %v2375
    %v2610 = vunpack.c.l.b16 %v2376
    %v2611 = vunpack.c.h.b16 %v2376
    %v2612 = vunpack.c.l.b16 %v2377
    %v2613 = vunpack.c.h.b16 %v2377
    %v2614 = vunpack.c.l.b16 %v2378
    %v2615 = vunpack.c.h.b16 %v2378
    %v2616 = vunpack.c.l.b16 %v2379
    %v2617 = vunpack.c.h.b16 %v2379
    %v2618 = vunpack.c.l.b16 %v2380
    %v2619 = vunpack.c.h.b16 %v2380
    %v2620 = vunpack.c.l.b16 %v2381
    %v2621 = vunpack.c.h.b16 %v2381
    %v2622 = vunpack.c.l.b16 %v2382
    %v2623 = vunpack.c.h.b16 %v2382
    %v2624 = vunpack.c.l.b16 %v2383
    %v2625 = vunpack.c.h.b16 %v2383
    %v2626 = vunpack.c.l.b16 %v2384
    %v2627 = vunpack.c.h.b16 %v2384
    %v2628 = vunpack.c.l.b16 %v2385
    %v2629 = vunpack.c.h.b16 %v2385
    %v2630 = vunpack.c.l.b16 %v2386
    %v2631 = vunpack.c.h.b16 %v2386
    %v2632 = vunpack.c.l.b16 %v2387
    %v2633 = vunpack.c.h.b16 %v2387
    %v2634 = vunpack.c.l.b16 %v2388
    %v2635 = vunpack.c.h.b16 %v2388
    %v2636 = vunpack.c.l.b16 %v2389
    %v2637 = vunpack.c.h.b16 %v2389
    %v2638 = vunpack.c.l.b16 %v2390
    %v2639 = vunpack.c.h.b16 %v2390
    %v2640 = vunpack.c.l.b16 %v2391
    %v2641 = vunpack.c.h.b16 %v2391
    %v2642 = vunpack.c.l.b16 %v2392
    %v2643 = vunpack.c.h.b16 %v2392
    %v2644 = vunpack.c.l.b16 %v2393
    %v2645 = vunpack.c.h.b16 %v2393
    %v2646 = vunpack.c.l.b16 %v2394
    %v2647 = vunpack.c.h.b16 %v2394
    %v2648 = vunpack.c.l.b16 %v2395
    %v2649 = vunpack.c.h.b16 %v2395
    %v2650 = vunpack.c.l.b16 %v2396
    %v2651 = vunpack.c.h.b16 %v2396
    %v2652 = vunpack.c.l.b16 %v2397
    %v2653 = vunpack.c.h.b16 %v2397
    %v2654 = vunpack.c.l.b16 %v2398
    %v2655 = vunpack.c.h.b16 %v2398
    %v2656 = vunpack.c.l.b16 %v2399
    %v2657 = vunpack.c.h.b16 %v2399
    %v2658 = vunpack.c.l.b16 %v2400
    %v2659 = vunpack.c.h.b16 %v2400
    %v2660 = vunpack.c.l.b16 %v2401
    %v2661 = vunpack.c.h.b16 %v2401
    %v2662 = vunpack.c.l.b16 %v2402
    %v2663 = vunpack.c.h.b16 %v2402
    %v2664 = vunpack.c.l.b16 %v2403
    %v2665 = vunpack.c.h.b16 %v2403
    %v2666 = vunpack.c.l.b16 %v2404
    %v2667 = vunpack.c.h.b16 %v2404
    %v2668 = vunpack.c.l.b16 %v2405
    %v2669 = vunpack.c.h.b16 %v2405
    %v2670 = vunpack.c.l.b16 %v2406
    %v2671 = vunpack.c.h.b16 %v2406
    %v2672 = vunpack.c.l.b16 %v2407
    %v2673 = vunpack.c.h.b16 %v2407
    %v2674 = vunpack.c.l.b16 %v2408
    %v2675 = vunpack.c.h.b16 %v2408
    %v2676 = vunpack.c.l.b16 %v2409
    %v2677 = vunpack.c.h.b16 %v2409
    %v2678 = vunpack.c.l.b16 %v2410
    %v2679 = vunpack.c.h.b16 %v2410
    %v2680 = vunpack.c.l.b16 %v2411
    %v2681 = vunpack.c.h.b16 %v2411
    %v2682 = vunpack.c.l.b16 %v2412
    %v2683 = vunpack.c.h.b16 %v2412
    %v2684 = vunpack.c.l.b16 %v2413
    %v2685 = vunpack.c.h.b16 %v2413
    %v2686 = vunpack.c.l.b16 %v2414
    %v2687 = vunpack.c.h.b16 %v2414
    %v2688 = vunpack.c.l.b16 %v2415
    %v2689 = vunpack.c.h.b16 %v2415
    %v2690 = vunpack.c.l.b16 %v2416
    %v2691 = vunpack.c.h.b16 %v2416
    %v2692 = vunpack.c.l.b16 %v2417
    %v2693 = vunpack.c.h.b16 %v2417
    %v2694 = vunpack.c.l.b16 %v2418
    %v2695 = vunpack.c.h.b16 %v2418
    %v2696 = vunpack.c.l.b16 %v2419
    %v2697 = vunpack.c.h.b16 %v2419
    %v2698 = vunpack.c.l.b16 %v2420
    %v2699 = vunpack.c.h.b16 %v2420
    %v2700 = vunpack.c.l.b16 %v2421
    %v2701 = vunpack.c.h.b16 %v2421
    %v2702 = vunpack.c.l.b16 %v2422
    %v2703 = vunpack.c.h.b16 %v2422
    %v2704 = vunpack.c.l.b16 %v2423
    %v2705 = vunpack.c.h.b16 %v2423
    %v2706 = vunpack.c.l.b16 %v2424
    %v2707 = vunpack.c.h.b16 %v2424
    %v2708 = vunpack.c.l.b16 %v2425
    %v2709 = vunpack.c.h.b16 %v2425
    %v2710 = vunpack.c.l.b16 %v2426
    %v2711 = vunpack.c.h.b16 %v2426
    %v2712 = vunpack.c.l.b16 %v2427
    %v2713 = vunpack.c.h.b16 %v2427
    %v2714 = vunpack.c.l.b16 %v2428
    %v2715 = vunpack.c.h.b16 %v2428
    %v2716 = vunpack.c.l.b16 %v2429
    %v2717 = vunpack.c.h.b16 %v2429
    %v2718 = vunpack.c.l.b16 %v2430
    %v2719 = vunpack.c.h.b16 %v2430
    %v2720 = vunpack.c.l.b16 %v2431
    %v2721 = vunpack.c.h.b16 %v2431
    %v2722 = vunpack.c.l.b16 %v2432
    %v2723 = vunpack.c.h.b16 %v2432
    %v2724 = vunpack.c.l.b16 %v2433
    %v2725 = vunpack.c.h.b16 %v2433
    %v2726 = vunpack.c.l.b16 %v2434
    %v2727 = vunpack.c.h.b16 %v2434
    %v2728 = vunpack.c.l.b16 %v2435
    %v2729 = vunpack.c.h.b16 %v2435
    %v2730 = vunpack.c.l.b16 %v2436
    %v2731 = vunpack.c.h.b16 %v2436
    %v2732 = vunpack.c.l.b16 %v2437
    %v2733 = vunpack.c.h.b16 %v2437
    %v2734 = vunpack.c.l.b16 %v2438
    %v2735 = vunpack.c.h.b16 %v2438
    %v2736 = vunpack.c.l.b16 %v2439
    %v2737 = vunpack.c.h.b16 %v2439
    %v2738 = vunpack.c.l.b16 %v2440
    %v2739 = vunpack.c.h.b16 %v2440
    %v2740 = vpack.c.b16 %v2552, %v2548
    %v2741 = vpack.c.b16 %v2553, %v2549
    %v2742 = vpack.c.b16 %v2554, %v2550
    %v2743 = vpack.c.b16 %v2555, %v2551
    %v2744 = vpack.c.b16 %v2560, %v2556
    %v2745 = vpack.c.b16 %v2561, %v2557
    %v2746 = vpack.c.b16 %v2562, %v2558
    %v2747 = vpack.c.b16 %v2563, %v2559
    %v2748 = vpack.c.b16 %v2568, %v2564
    %v2749 = vpack.c.b16 %v2569, %v2565
    %v2750 = vpack.c.b16 %v2570, %v2566
    %v2751 = vpack.c.b16 %v2571, %v2567
    %v2752 = vpack.c.b16 %v2576, %v2572
    %v2753 = vpack.c.b16 %v2577, %v2573
    %v2754 = vpack.c.b16 %v2578, %v2574
    %v2755 = vpack.c.b16 %v2579, %v2575
    %v2756 = vpack.c.b16 %v2584, %v2580
    %v2757 = vpack.c.b16 %v2585, %v2581
    %v2758 = vpack.c.b16 %v2586, %v2582
    %v2759 = vpack.c.b16 %v2587, %v2583
    %v2760 = vpack.c.b16 %v2592, %v2588
    %v2761 = vpack.c.b16 %v2593, %v2589
    %v2762 = vpack.c.b16 %v2594, %v2590
    %v2763 = vpack.c.b16 %v2595, %v2591
    %v2764 = vpack.c.b16 %v2600, %v2596
    %v2765 = vpack.c.b16 %v2601, %v2597
    %v2766 = vpack.c.b16 %v2602, %v2598
    %v2767 = vpack.c.b16 %v2603, %v2599
    %v2768 = vpack.c.b16 %v2608, %v2604
    %v2769 = vpack.c.b16 %v2609, %v2605
    %v2770 = vpack.c.b16 %v2610, %v2606
    %v2771 = vpack.c.b16 %v2611, %v2607
    %v2772 = vpack.c.b16 %v2616, %v2612
    %v2773 = vpack.c.b16 %v2617, %v2613
    %v2774 = vpack.c.b16 %v2618, %v2614
    %v2775 = vpack.c.b16 %v2619, %v2615
    %v2776 = vpack.c.b16 %v2624, %v2620
    %v2777 = vpack.c.b16 %v2625, %v2621
    %v2778 = vpack.c.b16 %v2626, %v2622
    %v2779 = vpack.c.b16 %v2627, %v2623
    %v2780 = vpack.c.b16 %v2632, %v2628
    %v2781 = vpack.c.b16 %v2633, %v2629
    %v2782 = vpack.c.b16 %v2634, %v2630
    %v2783 = vpack.c.b16 %v2635, %v2631
    %v2784 = vpack.c.b16 %v2640, %v2636
    %v2785 = vpack.c.b16 %v2641, %v2637
    %v2786 = vpack.c.b16 %v2642, %v2638
    %v2787 = vpack.c.b16 %v2643, %v2639
    %v2788 = vpack.c.b16 %v2648, %v2644
    %v2789 = vpack.c.b16 %v2649, %v2645
    %v2790 = vpack.c.b16 %v2650, %v2646
    %v2791 = vpack.c.b16 %v2651, %v2647
    %v2792 = vpack.c.b16 %v2656, %v2652
    %v2793 = vpack.c.b16 %v2657, %v2653
    %v2794 = vpack.c.b16 %v2658, %v2654
    %v2795 = vpack.c.b16 %v2659, %v2655
    %v2796 = vpack.c.b16 %v2664, %v2660
    %v2797 = vpack.c.b16 %v2665, %v2661
    %v2798 = vpack.c.b16 %v2666, %v2662
    %v2799 = vpack.c.b16 %v2667, %v2663
    %v2800 = vpack.c.b16 %v2672, %v2668
    %v2801 = vpack.c.b16 %v2673, %v2669
    %v2802 = vpack.c.b16 %v2674, %v2670
    %v2803 = vpack.c.b16 %v2675, %v2671
    %v2804 = vpack.c.b16 %v2680, %v2676
    %v2805 = vpack.c.b16 %v2681, %v2677
    %v2806 = vpack.c.b16 %v2682, %v2678
    %v2807 = vpack.c.b16 %v2683, %v2679
    %v2808 = vpack.c.b16 %v2688, %v2684
    %v2809 = vpack.c.b16 %v2689, %v2685
    %v2810 = vpack.c.b16 %v2690, %v2686
    %v2811 = vpack.c.b16 %v2691, %v2687
    %v2812 = vpack.c.b16 %v2696, %v2692
    %v2813 = vpack.c.b16 %v2697, %v2693
    %v2814 = vpack.c.b16 %v2698, %v2694
    %v2815 = vpack.c.b16 %v2699, %v2695
    %v2816 = vpack.c.b16 %v2704, %v2700
    %v2817 = vpack.c.b16 %v2705, %v2701
    %v2818 = vpack.c.b16 %v2706, %v2702
    %v2819 = vpack.c.b16 %v2707, %v2703
    %v2820 = vpack.c.b16 %v2712, %v2708
    %v2821 = vpack.c.b16 %v2713, %v2709
    %v2822 = vpack.c.b16 %v2714, %v2710
    %v2823 = vpack.c.b16 %v2715, %v2711
    %v2824 = vpack.c.b16 %v2720, %v2716
    %v2825 = vpack.c.b16 %v2721, %v2717
    %v2826 = vpack.c.b16 %v2722, %v2718
    %v2827 = vpack.c.b16 %v2723, %v2719
    %v2828 = vpack.c.b16 %v2728, %v2724
    %v2829 = vpack.c.b16 %v2729, %v2725
    %v2830 = vpack.c.b16 %v2730, %v2726
    %v2831 = vpack.c.b16 %v2731, %v2727
    %v2832 = vpack.c.b16 %v2736, %v2732
    %v2833 = vpack.c.b16 %v2737, %v2733
    %v2834 = vpack.c.b16 %v2738, %v2734
    %v2835 = vpack.c.b16 %v2739, %v2735
    %2932 = vmatprep.subr.bf16.mxu0 %v2741
    %2933 = vmatpush1.bf16.msra.mxu0 %v2740
    %2934 = vmatprep.subr.bf16.mxu0 %v2745
    %2935 = vmatpush1.bf16.msra.mxu0 %v2744
    %2936 = vmatprep.subr.bf16.mxu0 %v2749
    %2937 = vmatpush1.bf16.msra.mxu0 %v2748
    %2938 = vmatprep.subr.bf16.mxu0 %v2753
    %2939 = vmatpush1.bf16.msra.mxu0 %v2752
    %2940 = vmatprep.subr.bf16.mxu0 %v2757
    %2941 = vmatpush1.bf16.msra.mxu0 %v2756
    %2942 = vmatprep.subr.bf16.mxu0 %v2761
    %2943 = vmatpush1.bf16.msra.mxu0 %v2760
    %2944 = vmatprep.subr.bf16.mxu0 %v2765
    %2945 = vmatpush1.bf16.msra.mxu0 %v2764
    %2946 = vmatprep.subr.bf16.mxu0 %v2769
    %2947 = vmatpush1.bf16.msra.mxu0 %v2768
    %2948 = vmatprep.subr.bf16.mxu0 %v2773
    %2949 = vmatpush1.bf16.msra.mxu0 %v2772
    %2950 = vmatprep.subr.bf16.mxu0 %v2777
    %2951 = vmatpush1.bf16.msra.mxu0 %v2776
    %2952 = vmatprep.subr.bf16.mxu0 %v2781
    %2953 = vmatpush1.bf16.msra.mxu0 %v2780
    %2954 = vmatprep.subr.bf16.mxu0 %v2785
    %2955 = vmatpush1.bf16.msra.mxu0 %v2784
    %2956 = vmatprep.subr.bf16.mxu0 %v2789
    %2957 = vmatpush1.bf16.msra.mxu0 %v2788
    %2958 = vmatprep.subr.bf16.mxu0 %v2793
    %2959 = vmatpush1.bf16.msra.mxu0 %v2792
    %2960 = vmatprep.subr.bf16.mxu0 %v2797
    %2961 = vmatpush1.bf16.msra.mxu0 %v2796
    %2962 = vmatprep.subr.bf16.mxu0 %v2801
    %2963 = vmatpush1.bf16.msra.mxu0 %v2800
    %2964 = vmatprep.mubr.bf16.mxu0 %v2447
    %2965 = vmatmul.mubr.bf16.gmra.mrb[0].mxu0 %v2446
    %v2966 = vpop.f32.mrb[0].mxu0
    %v2967 = vadd.f32 0.0, %v2966
    %v2968 = vpop.f32.mrb[0].mxu0
    %v2969 = vadd.f32 0.0, %v2968
    %v2970 = vpop.f32.mrb[0].mxu0
    %v2971 = vpop.f32.mrb[0].mxu0
    %2972 = vdwg.mxu0
    %2973 = vmatprep.subr.bf16.mxu0 %v2805
    %2974 = vmatpush1.bf16.msra.mxu0 %v2804
    %2975 = vmatprep.subr.bf16.mxu0 %v2809
    %2976 = vmatpush1.bf16.msra.mxu0 %v2808
    %2977 = vmatprep.subr.bf16.mxu0 %v2813
    %2978 = vmatpush1.bf16.msra.mxu0 %v2812
    %2979 = vmatprep.subr.bf16.mxu0 %v2817
    %2980 = vmatpush1.bf16.msra.mxu0 %v2816
    %2981 = vmatprep.subr.bf16.mxu0 %v2821
    %2982 = vmatpush1.bf16.msra.mxu0 %v2820
    %2983 = vmatprep.subr.bf16.mxu0 %v2825
    %2984 = vmatpush1.bf16.msra.mxu0 %v2824
    %2985 = vmatprep.subr.bf16.mxu0 %v2829
    %2986 = vmatpush1.bf16.msra.mxu0 %v2828
    %2987 = vmatprep.subr.bf16.mxu0 %v2833
    %2988 = vmatpush1.bf16.msra.mxu0 %v2832
    %2989 = vmatprep.subr.bf16.mxu0 0
    %2990 = vmatpush1.bf16.msra.mxu0 0
    %2991 = vmatprep.subr.bf16.mxu0 0
    %2992 = vmatpush1.bf16.msra.mxu0 0
    %2993 = vmatprep.subr.bf16.mxu0 0
    %2994 = vmatpush1.bf16.msra.mxu0 0
    %2995 = vmatprep.subr.bf16.mxu0 0
    %2996 = vmatpush1.bf16.msra.mxu0 0
    %2997 = vmatprep.subr.bf16.mxu0 0
    %2998 = vmatpush1.bf16.msra.mxu0 0
    %2999 = vmatprep.subr.bf16.mxu0 0
    %3000 = vmatpush1.bf16.msra.mxu0 0
    %3001 = vmatprep.subr.bf16.mxu0 0
    %3002 = vmatpush1.bf16.msra.mxu0 0
    %3003 = vmatprep.subr.bf16.mxu0 0
    %3004 = vmatpush1.bf16.msra.mxu0 0
    %3005 = vmatprep.mubr.bf16.mxu0 0
    %3006 = vmatmul.mubr.bf16.gmra.mrb[0].mxu0 %v2448
    %v3007 = vpop.f32.mrb[0].mxu0
    %v3008 = vadd.f32 %v2967, %v3007
    %v3009 = vpop.f32.mrb[0].mxu0
    %v3010 = vadd.f32 %v2969, %v3009
    %v3011 = vpop.f32.mrb[0].mxu0
    %v3012 = vpop.f32.mrb[0].mxu0
    %3013 = vdwg.mxu0
    %3014 = vmatprep.subr.bf16.mxu0 %v2743
    %3015 = vmatpush1.bf16.msra.mxu0 %v2742
    %3016 = vmatprep.subr.bf16.mxu0 %v2747
    %3017 = vmatpush1.bf16.msra.mxu0 %v2746
    %3018 = vmatprep.subr.bf16.mxu0 %v2751
    %3019 = vmatpush1.bf16.msra.mxu0 %v2750
    %3020 = vmatprep.subr.bf16.mxu0 %v2755
    %3021 = vmatpush1.bf16.msra.mxu0 %v2754
    %3022 = vmatprep.subr.bf16.mxu0 %v2759
    %3023 = vmatpush1.bf16.msra.mxu0 %v2758
    %3024 = vmatprep.subr.bf16.mxu0 %v2763
    %3025 = vmatpush1.bf16.msra.mxu0 %v2762
    %3026 = vmatprep.subr.bf16.mxu0 %v2767
    %3027 = vmatpush1.bf16.msra.mxu0 %v2766
    %3028 = vmatprep.subr.bf16.mxu0 %v2771
    %3029 = vmatpush1.bf16.msra.mxu0 %v2770
    %3030 = vmatprep.subr.bf16.mxu0 %v2775
    %3031 = vmatpush1.bf16.msra.mxu0 %v2774
    %3032 = vmatprep.subr.bf16.mxu0 %v2779
    %3033 = vmatpush1.bf16.msra.mxu0 %v2778
    %3034 = vmatprep.subr.bf16.mxu0 %v2783
    %3035 = vmatpush1.bf16.msra.mxu0 %v2782
    %3036 = vmatprep.subr.bf16.mxu0 %v2787
    %3037 = vmatpush1.bf16.msra.mxu0 %v2786
    %3038 = vmatprep.subr.bf16.mxu0 %v2791
    %3039 = vmatpush1.bf16.msra.mxu0 %v2790
    %3040 = vmatprep.subr.bf16.mxu0 %v2795
    %3041 = vmatpush1.bf16.msra.mxu0 %v2794
    %3042 = vmatprep.subr.bf16.mxu0 %v2799
    %3043 = vmatpush1.bf16.msra.mxu0 %v2798
    %3044 = vmatprep.subr.bf16.mxu0 %v2803
    %3045 = vmatpush1.bf16.msra.mxu0 %v2802
    %3046 = vmatprep.mubr.bf16.mxu0 %v2447
    %3047 = vmatmul.mubr.bf16.gmra.mrb[0].mxu0 %v2446
    %v3048 = vpop.f32.mrb[0].mxu0
    %v3049 = vadd.f32 0.0, %v3048
    %v3050 = vpop.f32.mrb[0].mxu0
    %v3051 = vadd.f32 0.0, %v3050
    %v3052 = vpop.f32.mrb[0].mxu0
    %v3053 = vpop.f32.mrb[0].mxu0
    %3054 = vdwg.mxu0
    %3055 = vmatprep.subr.bf16.mxu0 %v2807
    %3056 = vmatpush1.bf16.msra.mxu0 %v2806
    %3057 = vmatprep.subr.bf16.mxu0 %v2811
    %3058 = vmatpush1.bf16.msra.mxu0 %v2810
    %3059 = vmatprep.subr.bf16.mxu0 %v2815
    %3060 = vmatpush1.bf16.msra.mxu0 %v2814
    %3061 = vmatprep.subr.bf16.mxu0 %v2819
    %3062 = vmatpush1.bf16.msra.mxu0 %v2818
    %3063 = vmatprep.subr.bf16.mxu0 %v2823
    %3064 = vmatpush1.bf16.msra.mxu0 %v2822
    %3065 = vmatprep.subr.bf16.mxu0 %v2827
    %3066 = vmatpush1.bf16.msra.mxu0 %v2826
    %3067 = vmatprep.subr.bf16.mxu0 %v2831
    %3068 = vmatpush1.bf16.msra.mxu0 %v2830
    %3069 = vmatprep.subr.bf16.mxu0 %v2835
    %3070 = vmatpush1.bf16.msra.mxu0 %v2834
    %3071 = vmatprep.subr.bf16.mxu0 0
    %3072 = vmatpush1.bf16.msra.mxu0 0
    %3073 = vmatprep.subr.bf16.mxu0 0
    %3074 = vmatpush1.bf16.msra.mxu0 0
    %3075 = vmatprep.subr.bf16.mxu0 0
    %3076 = vmatpush1.bf16.msra.mxu0 0
    %3077 = vmatprep.subr.bf16.mxu0 0
    %3078 = vmatpush1.bf16.msra.mxu0 0
    %3079 = vmatprep.subr.bf16.mxu0 0
    %3080 = vmatpush1.bf16.msra.mxu0 0
    %3081 = vmatprep.subr.bf16.mxu0 0
    %3082 = vmatpush1.bf16.msra.mxu0 0
    %3083 = vmatprep.subr.bf16.mxu0 0
    %3084 = vmatpush1.bf16.msra.mxu0 0
    %3085 = vmatprep.subr.bf16.mxu0 0
    %3086 = vmatpush1.bf16.msra.mxu0 0
    %3087 = vmatprep.mubr.bf16.mxu0 0
    %3088 = vmatmul.mubr.bf16.gmra.mrb[0].mxu0 %v2448
    %v3089 = vpop.f32.mrb[0].mxu0
    %v3090 = vadd.f32 %v3049, %v3089
    %v3091 = vpop.f32.mrb[0].mxu0
    %v3092 = vadd.f32 %v3051, %v3091
    %v3093 = vpop.f32.mrb[0].mxu0
    %v3094 = vpop.f32.mrb[0].mxu0
    %3095 = vdwg.mxu0
    %v3096 = vadd.f32 %v2338, %v3008
    %v3097 = vadd.f32 %v2339, %v3010
    %v3098 = vadd.f32 %v2340, %v3090
    %v3099 = vadd.f32 %v2341, %v3092
    %v3100 = vld [vmem:[#allocation4] sm:$0xf]
    %v3102 = vlaneseq
    %v3103 = vshrl.u32 %v3102, 7
    %v3104 = vsub.s32 0, %v3103
    %v3105 = vrot.slane %v3100, %v3104
    %v3106 = vlaneseq
    %v3107 = vshrl.u32 %v3106, 7
    %v3108 = vsub.s32 1, %v3107
    %v3109 = vrot.slane %v3100, %v3108
    %v3110 = vlaneseq
    %v3111 = vshrl.u32 %v3110, 7
    %v3112 = vsub.s32 2, %v3111
    %v3113 = vrot.slane %v3100, %v3112
    %v3114 = vlaneseq
    %v3115 = vshrl.u32 %v3114, 7
    %v3116 = vsub.s32 3, %v3115
    %v3117 = vrot.slane %v3100, %v3116
    %v3122 = vadd.f32 %v3096, %v3105
    %v3123 = vadd.f32 %v3097, %v3109
    %v3124 = vadd.f32 %v3098, %v3113
    %v3125 = vadd.f32 %v3099, %v3117
    %v3126 = vmax.f32 %v3122, 0.0
    %v3127 = vmax.f32 %v3123, 0.0
    %v3128 = vmax.f32 %v3124, 0.0
    %v3129 = vmax.f32 %v3125, 0.0
    %v3130 = vpack.c.bf16 %v3126, %v3126
    %v3131 = vpack.c.bf16 %v3127, %v3127
    %v3132 = vpack.c.bf16 %v3128, %v3128
    %v3133 = vpack.c.bf16 %v3129, %v3129
    %v3134 = vld [vmem:[#allocation6] sm:$0xf]
    %v3135 = vld [vmem:[#allocation6 + $0x4] sm:$0xf]
    %v3136 = vld [vmem:[#allocation6 + $0x8] sm:$0xf]
    %v3137 = vld [vmem:[#allocation6 + $0xc] sm:$0xf]
    %v3138 = vld [vmem:[#allocation6 + $0x10] sm:$0xf]
    %v3139 = vld [vmem:[#allocation6 + $0x14] sm:$0xf]
    %v3140 = vld [vmem:[#allocation6 + $0x18] sm:$0xf]
    %v3141 = vld [vmem:[#allocation6 + $0x1c] sm:$0xf]
    %v3142 = vld [vmem:[#allocation6 + $0x20] sm:$0xf]
    %v3143 = vld [vmem:[#allocation6 + $0x24] sm:$0xf]
    %v3144 = vld [vmem:[#allocation6 + $0x28] sm:$0xf]
    %v3145 = vld [vmem:[#allocation6 + $0x2c] sm:$0xf]
    %v3146 = vld [vmem:[#allocation6 + $0x30] sm:$0xf]
    %v3147 = vld [vmem:[#allocation6 + $0x34] sm:$0xf]
    %v3148 = vld [vmem:[#allocation6 + $0x38] sm:$0xf]
    %v3149 = vld [vmem:[#allocation6 + $0x3c] sm:$0xf]
    %v3150 = vld [vmem:[#allocation6 + $0x40] sm:$0xf]
    %v3151 = vld [vmem:[#allocation6 + $0x44] sm:$0xf]
    %v3152 = vld [vmem:[#allocation6 + $0x48] sm:$0xf]
    %v3153 = vld [vmem:[#allocation6 + $0x4c] sm:$0xf]
    %v3154 = vld [vmem:[#allocation6 + $0x50] sm:$0xf]
    %v3155 = vld [vmem:[#allocation6 + $0x54] sm:$0xf]
    %v3156 = vld [vmem:[#allocation6 + $0x58] sm:$0xf]
    %v3157 = vld [vmem:[#allocation6 + $0x5c] sm:$0xf]
    %v3158 = vld [vmem:[#allocation6 + $0x60] sm:$0xf]
    %v3159 = vld [vmem:[#allocation6 + $0x64] sm:$0xf]
    %v3160 = vld [vmem:[#allocation6 + $0x68] sm:$0xf]
    %v3161 = vld [vmem:[#allocation6 + $0x6c] sm:$0xf]
    %v3162 = vld [vmem:[#allocation6 + $0x70] sm:$0xf]
    %v3163 = vld [vmem:[#allocation6 + $0x74] sm:$0xf]
    %v3164 = vld [vmem:[#allocation6 + $0x78] sm:$0xf]
    %v3165 = vld [vmem:[#allocation6 + $0x7c] sm:$0xf]
    %v3166 = vld [vmem:[#allocation6 + $0x80] sm:$0xf]
    %v3167 = vld [vmem:[#allocation6 + $0x84] sm:$0xf]
    %v3168 = vld [vmem:[#allocation6 + $0x88] sm:$0xf]
    %v3169 = vld [vmem:[#allocation6 + $0x8c] sm:$0xf]
    %v3170 = vld [vmem:[#allocation6 + $0x90] sm:$0xf]
    %v3171 = vld [vmem:[#allocation6 + $0x94] sm:$0xf]
    %v3172 = vld [vmem:[#allocation6 + $0x98] sm:$0xf]
    %v3173 = vld [vmem:[#allocation6 + $0x9c] sm:$0xf]
    %v3174 = vld [vmem:[#allocation6 + $0xa0] sm:$0xf]
    %v3175 = vld [vmem:[#allocation6 + $0xa4] sm:$0xf]
    %v3176 = vld [vmem:[#allocation6 + $0xa8] sm:$0xf]
    %v3177 = vld [vmem:[#allocation6 + $0xac] sm:$0xf]
    %v3178 = vld [vmem:[#allocation6 + $0xb0] sm:$0xf]
    %v3179 = vld [vmem:[#allocation6 + $0xb4] sm:$0xf]
    %v3180 = vld [vmem:[#allocation6 + $0xb8] sm:$0xf]
    %v3181 = vld [vmem:[#allocation6 + $0xbc] sm:$0xf]
    %v3182 = vld [vmem:[#allocation6 + $0xc0] sm:$0xf]
    %v3183 = vld [vmem:[#allocation6 + $0xc4] sm:$0xf]
    %v3184 = vld [vmem:[#allocation6 + $0xc8] sm:$0xf]
    %v3185 = vld [vmem:[#allocation6 + $0xcc] sm:$0xf]
    %v3186 = vld [vmem:[#allocation6 + $0xd0] sm:$0xf]
    %v3187 = vld [vmem:[#allocation6 + $0xd4] sm:$0xf]
    %v3188 = vld [vmem:[#allocation6 + $0xd8] sm:$0xf]
    %v3189 = vld [vmem:[#allocation6 + $0xdc] sm:$0xf]
    %v3190 = vld [vmem:[#allocation6 + $0xe0] sm:$0xf]
    %v3191 = vld [vmem:[#allocation6 + $0xe4] sm:$0xf]
    %v3192 = vld [vmem:[#allocation6 + $0xe8] sm:$0xf]
    %v3193 = vld [vmem:[#allocation6 + $0xec] sm:$0xf]
    %v3194 = vld [vmem:[#allocation6 + $0xf0] sm:$0xf]
    %v3195 = vld [vmem:[#allocation6 + $0xf4] sm:$0xf]
    %v3196 = vld [vmem:[#allocation6 + $0xf8] sm:$0xf]
    %v3197 = vld [vmem:[#allocation6 + $0xfc] sm:$0xf]
    %v3198 = vld [vmem:[#allocation7] sm:$0x1]
    %v3200 = vlaneseq
    %v3201 = vshrl.u32 %v3200, 7
    %v3202 = vsub.s32 0, %v3201
    %v3203 = vrot.slane %v3198, %v3202
    %v3269 = vunpack.c.l.b16 %v3134
    %v3270 = vunpack.c.l.b16 %v3135
    %v3271 = vunpack.c.l.b16 %v3136
    %v3272 = vunpack.c.l.b16 %v3137
    %v3273 = vunpack.c.l.b16 %v3138
    %v3274 = vunpack.c.l.b16 %v3139
    %v3275 = vunpack.c.l.b16 %v3140
    %v3276 = vunpack.c.l.b16 %v3141
    %v3277 = vunpack.c.l.b16 %v3142
    %v3278 = vunpack.c.l.b16 %v3143
    %v3279 = vunpack.c.l.b16 %v3144
    %v3280 = vunpack.c.l.b16 %v3145
    %v3281 = vunpack.c.l.b16 %v3146
    %v3282 = vunpack.c.l.b16 %v3147
    %v3283 = vunpack.c.l.b16 %v3148
    %v3284 = vunpack.c.l.b16 %v3149
    %v3285 = vunpack.c.l.b16 %v3150
    %v3286 = vunpack.c.l.b16 %v3151
    %v3287 = vunpack.c.l.b16 %v3152
    %v3288 = vunpack.c.l.b16 %v3153
    %v3289 = vunpack.c.l.b16 %v3154
    %v3290 = vunpack.c.l.b16 %v3155
    %v3291 = vunpack.c.l.b16 %v3156
    %v3292 = vunpack.c.l.b16 %v3157
    %v3293 = vunpack.c.l.b16 %v3158
    %v3294 = vunpack.c.l.b16 %v3159
    %v3295 = vunpack.c.l.b16 %v3160
    %v3296 = vunpack.c.l.b16 %v3161
    %v3297 = vunpack.c.l.b16 %v3162
    %v3298 = vunpack.c.l.b16 %v3163
    %v3299 = vunpack.c.l.b16 %v3164
    %v3300 = vunpack.c.l.b16 %v3165
    %v3301 = vunpack.c.l.b16 %v3166
    %v3302 = vunpack.c.l.b16 %v3167
    %v3303 = vunpack.c.l.b16 %v3168
    %v3304 = vunpack.c.l.b16 %v3169
    %v3305 = vunpack.c.l.b16 %v3170
    %v3306 = vunpack.c.l.b16 %v3171
    %v3307 = vunpack.c.l.b16 %v3172
    %v3308 = vunpack.c.l.b16 %v3173
    %v3309 = vunpack.c.l.b16 %v3174
    %v3310 = vunpack.c.l.b16 %v3175
    %v3311 = vunpack.c.l.b16 %v3176
    %v3312 = vunpack.c.l.b16 %v3177
    %v3313 = vunpack.c.l.b16 %v3178
    %v3314 = vunpack.c.l.b16 %v3179
    %v3315 = vunpack.c.l.b16 %v3180
    %v3316 = vunpack.c.l.b16 %v3181
    %v3317 = vunpack.c.l.b16 %v3182
    %v3318 = vunpack.c.l.b16 %v3183
    %v3319 = vunpack.c.l.b16 %v3184
    %v3320 = vunpack.c.l.b16 %v3185
    %v3321 = vunpack.c.l.b16 %v3186
    %v3322 = vunpack.c.l.b16 %v3187
    %v3323 = vunpack.c.l.b16 %v3188
    %v3324 = vunpack.c.l.b16 %v3189
    %v3325 = vunpack.c.l.b16 %v3190
    %v3326 = vunpack.c.l.b16 %v3191
    %v3327 = vunpack.c.l.b16 %v3192
    %v3328 = vunpack.c.l.b16 %v3193
    %v3329 = vunpack.c.l.b16 %v3194
    %v3330 = vunpack.c.l.b16 %v3195
    %v3331 = vunpack.c.l.b16 %v3196
    %v3332 = vunpack.c.l.b16 %v3197
    %v3333 = vpack.c.b16 %v3270, %v3269
    %v3334 = vpack.c.b16 %v3272, %v3271
    %v3335 = vpack.c.b16 %v3274, %v3273
    %v3336 = vpack.c.b16 %v3276, %v3275
    %v3337 = vpack.c.b16 %v3278, %v3277
    %v3338 = vpack.c.b16 %v3280, %v3279
    %v3339 = vpack.c.b16 %v3282, %v3281
    %v3340 = vpack.c.b16 %v3284, %v3283
    %v3341 = vpack.c.b16 %v3286, %v3285
    %v3342 = vpack.c.b16 %v3288, %v3287
    %v3343 = vpack.c.b16 %v3290, %v3289
    %v3344 = vpack.c.b16 %v3292, %v3291
    %v3345 = vpack.c.b16 %v3294, %v3293
    %v3346 = vpack.c.b16 %v3296, %v3295
    %v3347 = vpack.c.b16 %v3298, %v3297
    %v3348 = vpack.c.b16 %v3300, %v3299
    %v3349 = vpack.c.b16 %v3302, %v3301
    %v3350 = vpack.c.b16 %v3304, %v3303
    %v3351 = vpack.c.b16 %v3306, %v3305
    %v3352 = vpack.c.b16 %v3308, %v3307
    %v3353 = vpack.c.b16 %v3310, %v3309
    %v3354 = vpack.c.b16 %v3312, %v3311
    %v3355 = vpack.c.b16 %v3314, %v3313
    %v3356 = vpack.c.b16 %v3316, %v3315
    %v3357 = vpack.c.b16 %v3318, %v3317
    %v3358 = vpack.c.b16 %v3320, %v3319
    %v3359 = vpack.c.b16 %v3322, %v3321
    %v3360 = vpack.c.b16 %v3324, %v3323
    %v3361 = vpack.c.b16 %v3326, %v3325
    %v3362 = vpack.c.b16 %v3328, %v3327
    %v3363 = vpack.c.b16 %v3330, %v3329
    %v3364 = vpack.c.b16 %v3332, %v3331
    %3397 = vmatprep.subr.bf16.mxu0 0
    %3398 = vmatpush1.bf16.msra.mxu0 %v3333
    %3399 = vmatprep.subr.bf16.mxu0 0
    %3400 = vmatpush1.bf16.msra.mxu0 %v3334
    %3401 = vmatprep.subr.bf16.mxu0 0
    %3402 = vmatpush1.bf16.msra.mxu0 %v3335
    %3403 = vmatprep.subr.bf16.mxu0 0
    %3404 = vmatpush1.bf16.msra.mxu0 %v3336
    %3405 = vmatprep.subr.bf16.mxu0 0
    %3406 = vmatpush1.bf16.msra.mxu0 %v3337
    %3407 = vmatprep.subr.bf16.mxu0 0
    %3408 = vmatpush1.bf16.msra.mxu0 %v3338
    %3409 = vmatprep.subr.bf16.mxu0 0
    %3410 = vmatpush1.bf16.msra.mxu0 %v3339
    %3411 = vmatprep.subr.bf16.mxu0 0
    %3412 = vmatpush1.bf16.msra.mxu0 %v3340
    %3413 = vmatprep.subr.bf16.mxu0 0
    %3414 = vmatpush1.bf16.msra.mxu0 %v3341
    %3415 = vmatprep.subr.bf16.mxu0 0
    %3416 = vmatpush1.bf16.msra.mxu0 %v3342
    %3417 = vmatprep.subr.bf16.mxu0 0
    %3418 = vmatpush1.bf16.msra.mxu0 %v3343
    %3419 = vmatprep.subr.bf16.mxu0 0
    %3420 = vmatpush1.bf16.msra.mxu0 %v3344
    %3421 = vmatprep.subr.bf16.mxu0 0
    %3422 = vmatpush1.bf16.msra.mxu0 %v3345
    %3423 = vmatprep.subr.bf16.mxu0 0
    %3424 = vmatpush1.bf16.msra.mxu0 %v3346
    %3425 = vmatprep.subr.bf16.mxu0 0
    %3426 = vmatpush1.bf16.msra.mxu0 %v3347
    %3427 = vmatprep.subr.bf16.mxu0 0
    %3428 = vmatpush1.bf16.msra.mxu0 %v3348
    %3429 = vmatprep.mubr.bf16.mxu0 %v3131
    %3430 = vmatmul.mubr.bf16.gmra.mrb[0].mxu0 %v3130
    %v3431 = vpop.f32.mrb[0].mxu0
    %v3432 = vadd.f32 %v3203, %v3431
    %v3433 = vpop.f32.mrb[0].mxu0
    %v3434 = vpop.f32.mrb[0].mxu0
    %v3435 = vpop.f32.mrb[0].mxu0
    %3436 = vdwg.mxu0
    %3437 = vmatprep.subr.bf16.mxu0 0
    %3438 = vmatpush1.bf16.msra.mxu0 %v3349
    %3439 = vmatprep.subr.bf16.mxu0 0
    %3440 = vmatpush1.bf16.msra.mxu0 %v3350
    %3441 = vmatprep.subr.bf16.mxu0 0
    %3442 = vmatpush1.bf16.msra.mxu0 %v3351
    %3443 = vmatprep.subr.bf16.mxu0 0
    %3444 = vmatpush1.bf16.msra.mxu0 %v3352
    %3445 = vmatprep.subr.bf16.mxu0 0
    %3446 = vmatpush1.bf16.msra.mxu0 %v3353
    %3447 = vmatprep.subr.bf16.mxu0 0
    %3448 = vmatpush1.bf16.msra.mxu0 %v3354
    %3449 = vmatprep.subr.bf16.mxu0 0
    %3450 = vmatpush1.bf16.msra.mxu0 %v3355
    %3451 = vmatprep.subr.bf16.mxu0 0
    %3452 = vmatpush1.bf16.msra.mxu0 %v3356
    %3453 = vmatprep.subr.bf16.mxu0 0
    %3454 = vmatpush1.bf16.msra.mxu0 %v3357
    %3455 = vmatprep.subr.bf16.mxu0 0
    %3456 = vmatpush1.bf16.msra.mxu0 %v3358
    %3457 = vmatprep.subr.bf16.mxu0 0
    %3458 = vmatpush1.bf16.msra.mxu0 %v3359
    %3459 = vmatprep.subr.bf16.mxu0 0
    %3460 = vmatpush1.bf16.msra.mxu0 %v3360
    %3461 = vmatprep.subr.bf16.mxu0 0
    %3462 = vmatpush1.bf16.msra.mxu0 %v3361
    %3463 = vmatprep.subr.bf16.mxu0 0
    %3464 = vmatpush1.bf16.msra.mxu0 %v3362
    %3465 = vmatprep.subr.bf16.mxu0 0
    %3466 = vmatpush1.bf16.msra.mxu0 %v3363
    %3467 = vmatprep.subr.bf16.mxu0 0
    %3468 = vmatpush1.bf16.msra.mxu0 %v3364
    %3469 = vmatprep.mubr.bf16.mxu0 %v3133
    %3470 = vmatmul.mubr.bf16.gmra.mrb[0].mxu0 %v3132
    %v3471 = vpop.f32.mrb[0].mxu0
    %v3472 = vadd.f32 %v3432, %v3471
    %v3473 = vpop.f32.mrb[0].mxu0
    %v3474 = vpop.f32.mrb[0].mxu0
    %v3475 = vpop.f32.mrb[0].mxu0
    %3476 = vdwg.mxu0
    %v3477 = vpack.c.bf16 %v3472, %v3472
    %3478 = vst [vmem:[%s6] sm:$0xf] %v3477
    // Predicated region
    $region42: #{usc_forward.1} parent=1 // pred_check
      _
    $region43: #{usc_forward.1} parent=1 // pred_check_branch
      %3480 = sbr.rel (0) target = $region45
    $region44: #{usc_forward.1} parent=1 // pred_region
      _
    $region45: #{usc_forward.1} parent=1 // pred_fallthru
      _
    // Predicated region
    $region46: #{usc_forward.1} parent=1 // pred_check
      _
    $region47: #{usc_forward.1} parent=1 // pred_check_branch
      %3482 = sbr.rel (0) target = $region49
    $region48: #{usc_forward.1} parent=1 // pred_region
      _
    $region49: #{usc_forward.1} parent=1 // pred_fallthru
      _
    %3483 = vsyncpa [#allocation3], 1
    %3484 = vsyncpa [#allocation5], 1
    %3485 = vsyncpa [#allocation8], 1

</llo_original>
